<compile_context>
chip_gen: v5e
topology: v5e:2x2
jax: 0.10.0
libtpu: 0.0.40
codegen_flags: <defaults>
</compile_context>

<pallas_src>
import jax
import jax.numpy as jnp
from jax.experimental import pallas as pl
from jax.experimental.pallas import tpu as pltpu

EPS = 1e-5  # nn.InstanceNorm2d default eps (affine=False, biased variance)


# ---------------------------------------------------------------------------
# Fused kernel factory (closes over static shapes)
# ---------------------------------------------------------------------------
def _make_fused_kernel(B, C, H, W):
    Wp, Hp = W + 2, H + 2          # reflection-padded spatial dims
    PW = Hp * Wp                   # flat length of one padded plane
    HWo = H * Wp                   # flat length of one "wide" output plane
    TAIL = 2                       # slack lanes so tap slices never run OOB
    inv_n = 1.0 / float(H * W)

    def lane_roll(x, shift):
        # result[..., i] = x[..., i - shift]  (cyclic), via slices + concat
        n = x.shape[-1]
        s = shift % n
        if s == 0:
            return x
        return jnp.concatenate([x[:, n - s:], x[:, :n - s]], axis=1)

    def taps(pad_flat):
        # pad_flat: (Cin, B*PW + TAIL) flattened padded planes, image-major.
        # Returns (9*Cin, B*HWo) patch rows in (tap, ci) order ("wide" layout:
        # output lane n = b*HWo + y*Wp + x', only x' < W columns are valid).
        blocks = []
        for ky in range(3):
            for kx in range(3):
                off = ky * Wp + kx
                per_img = [pad_flat[:, b * PW + off: b * PW + off + HWo]
                           for b in range(B)]
                blocks.append(per_img[0] if B == 1
                              else jnp.concatenate(per_img, axis=1))
        return jnp.concatenate(blocks, axis=0)

    def instance_norm(acc, valid):
        # acc: (Cout, B*HWo) f32, valid: (1, B*HWo) bool (masks pad columns).
        outs = []
        for b in range(B):
            a = acc[:, b * HWo:(b + 1) * HWo]
            v = valid[:, b * HWo:(b + 1) * HWo]
            am = jnp.where(v, a, 0.0)
            s1 = jnp.sum(am, axis=1, keepdims=True)
            s2 = jnp.sum(am * a, axis=1, keepdims=True)
            mean = s1 * inv_n
            var = jnp.maximum(s2 * inv_n - mean * mean, 0.0)
            outs.append((a - mean) * jax.lax.rsqrt(var + EPS))
        return outs[0] if B == 1 else jnp.concatenate(outs, axis=1)

    def kernel(xpf_ref, w1_ref, b1_ref, w2_ref, b2_ref, colmod_ref, out_ref):
        xpf = xpf_ref[...]                       # (Cin, B*PW + TAIL)
        colmod = colmod_ref[...]                 # (1, B*HWo), lane % Wp
        valid = colmod < W
        is_first = colmod == 0
        is_last = colmod == (Wp - 1)

        # ---- conv1 (3x3 on reflection-padded input) + InstanceNorm + ReLU
        acc1 = jnp.dot(w1_ref[...], taps(xpf),
                       preferred_element_type=jnp.float32) + b1_ref[...]
        h1 = jnp.maximum(instance_norm(acc1, valid), 0.0)   # (C, B*HWo)

        # ---- in-VMEM reflection pad of h1 (wide layout -> flat padded layout)
        # Horizontal reflection: per 18-wide row [v1, v0..v15, v14].
        main = lane_roll(h1, 1)       # shift right by one column
        left = lane_roll(h1, -1)      # column 0  <- original column 1
        right = lane_roll(h1, 3)      # column 17 <- original column 14
        hpad = jnp.where(is_first, left, jnp.where(is_last, right, main))
        # Vertical reflection: rows [1, 0..H-1, H-2], per image.
        pieces = []
        for b in range(B):
            hb = hpad[:, b * HWo:(b + 1) * HWo]
            pieces += [hb[:, Wp:2 * Wp],                     # row 1
                       hb,                                   # rows 0..H-1
                       hb[:, (H - 2) * Wp:(H - 1) * Wp]]     # row H-2
        pieces.append(jnp.zeros((hpad.shape[0], TAIL), jnp.float32))
        h1_padded = jnp.concatenate(pieces, axis=1)          # (C, B*PW + TAIL)

        # ---- conv2 + InstanceNorm + residual add
        acc2 = jnp.dot(w2_ref[...], taps(h1_padded),
                       preferred_element_type=jnp.float32) + b2_ref[...]
        y = instance_norm(acc2, valid)

        # residual = interior of the padded input (= original x), wide layout
        res = [xpf[:, b * PW + Wp + 1: b * PW + Wp + 1 + HWo] for b in range(B)]
        res = res[0] if B == 1 else jnp.concatenate(res, axis=1)

        out_ref[...] = (y + res).astype(out_ref.dtype)

    return kernel


# ---------------------------------------------------------------------------
# Wrapper
# ---------------------------------------------------------------------------
@jax.jit
def ins_res_block(x, w1, b1, w2, b2):
    """x: (B, C, H, W) NCHW float32.  Returns (B, C, H, W)."""
    B, C, H, W = x.shape
    Wp, Hp = W + 2, H + 2
    PW = Hp * Wp
    HWo = H * Wp
    TAIL = 2

    # Reflection pad + flatten each padded plane (layout plumbing, HBM-side).
    xpad = jnp.pad(x, ((0, 0), (0, 0), (1, 1), (1, 1)), mode="reflect")
    xpf = xpad.reshape(B, C, PW).transpose(1, 0, 2).reshape(C, B * PW)
    xpf = jnp.concatenate([xpf, jnp.zeros((C, TAIL), xpf.dtype)], axis=1)
    xpf = xpf.astype(jnp.float32)

    # Weights flattened to (Cout, 9*Cin) with (tap, ci) column order.
    w1p = w1.transpose(0, 2, 3, 1).reshape(w1.shape[0], -1).astype(jnp.float32)
    w2p = w2.transpose(0, 2, 3, 1).reshape(w2.shape[0], -1).astype(jnp.float32)
    b1c = b1.reshape(-1, 1).astype(jnp.float32)
    b2c = b2.reshape(-1, 1).astype(jnp.float32)

    # Per-lane column index (lane % Wp) for masking / padding selects.
    colmod = (jnp.arange(B * HWo, dtype=jnp.int32) % Wp).reshape(1, B * HWo)

    kernel = _make_fused_kernel(B, C, H, W)
    vmem = pl.BlockSpec(memory_space=pltpu.MemorySpace.VMEM)
    out_wide = pl.pallas_call(
        kernel,
        out_shape=jax.ShapeDtypeStruct((w2.shape[0], B * HWo), jnp.float32),
        in_specs=[vmem] * 6,
        out_specs=vmem,
    )(xpf, w1p, b1c, w2p, b2c, colmod)

    # Drop the 2 pad columns per row and restore NCHW.
    out = out_wide.reshape(C, B, H, Wp)[:, :, :, :W].transpose(1, 0, 2, 3)
    return out.astype(x.dtype)


# ---------------------------------------------------------------------------
# Pure-JAX reference (for correctness check)
# ---------------------------------------------------------------------------
def _reference(x, w1, b1, w2, b2):
    def conv(v, w, b):
        vp = jnp.pad(v, ((0, 0), (0, 0), (1, 1), (1, 1)), mode="reflect")
        y = jax.lax.conv_general_dilated(
            vp, w, (1, 1), "VALID",
            dimension_numbers=("NCHW", "OIHW", "NCHW"))
        return y + b.reshape(1, -1, 1, 1)

    def inorm(v):
        mean = v.mean(axis=(2, 3), keepdims=True)
        var = ((v - mean) ** 2).mean(axis=(2, 3), keepdims=True)
        return (v - mean) * jax.lax.rsqrt(var + EPS)

    h = jnp.maximum(inorm(conv(x, w1, b1)), 0.0)
    return inorm(conv(h, w2, b2)) + x


# ---------------------------------------------------------------------------
if __name__ == "__main__":
    B, C, H, W = 2, 4, 16, 16   # inplanes = planes = 4, stride = 1, dropout = 0
    key = jax.random.PRNGKey(0)
    kx, kw1, kb1, kw2, kb2 = jax.random.split(key, 5)

    x = jax.random.normal(kx, (B, C, H, W), dtype=jnp.float32)

    # gaussian_weights_init: conv weights ~ N(0, 0.02); biases use PyTorch's
    # default conv init U(-1/sqrt(fan_in), 1/sqrt(fan_in)).
    w1 = 0.02 * jax.random.normal(kw1, (C, C, 3, 3), dtype=jnp.float32)
    w2 = 0.02 * jax.random.normal(kw2, (C, C, 3, 3), dtype=jnp.float32)
    bound = 1.0 / float(C * 9) ** 0.5
    b1 = jax.random.uniform(kb1, (C,), jnp.float32, -bound, bound)
    b2 = jax.random.uniform(kb2, (C,), jnp.float32, -bound, bound)

    out = jax.block_until_ready(ins_res_block(x, w1, b1, w2, b2))
    ref = _reference(x, w1, b1, w2, b2)

    assert out.shape == (B, C, H, W)
    assert jnp.allclose(out, ref, atol=1e-4, rtol=1e-4), "mismatch vs reference"

    print("KERNEL_OK")
</pallas_src>

<mosaic_0001>
module attributes {stable_mosaic.version = 11 : i64} {
  func.func @kernel(%arg0: memref<4x650xf32, #tpu.memory_space<vmem>>, %arg1: memref<4x36xf32, #tpu.memory_space<vmem>>, %arg2: memref<4x1xf32, #tpu.memory_space<vmem>>, %arg3: memref<4x36xf32, #tpu.memory_space<vmem>>, %arg4: memref<4x1xf32, #tpu.memory_space<vmem>>, %arg5: memref<1x576xi32, #tpu.memory_space<vmem>>, %arg6: memref<4x576xf32, #tpu.memory_space<vmem>>) attributes {dimension_semantics = [], scalar_prefetch = 0 : i64, scratch_operands = 0 : i64, tpu.core_type = #tpu.core_type<tc>} {
    %c0 = arith.constant 0 : index
    %c0_0 = arith.constant 0 : index
    %0 = vector.load %arg0[%c0, %c0_0] : memref<4x650xf32, #tpu.memory_space<vmem>>, vector<4x650xf32>
    %c0_1 = arith.constant 0 : index
    %c0_2 = arith.constant 0 : index
    %1 = vector.load %arg5[%c0_1, %c0_2] : memref<1x576xi32, #tpu.memory_space<vmem>>, vector<1x576xi32>
    %c16_i32 = arith.constant 16 : i32
    %2 = vector.broadcast %c16_i32 : i32 to vector<1x576xi32>
    %3 = arith.cmpi slt, %1, %2 : vector<1x576xi32>
    %c0_i32 = arith.constant 0 : i32
    %4 = vector.broadcast %c0_i32 : i32 to vector<1x576xi32>
    %5 = arith.cmpi eq, %1, %4 : vector<1x576xi32>
    %c17_i32 = arith.constant 17 : i32
    %6 = vector.broadcast %c17_i32 : i32 to vector<1x576xi32>
    %7 = arith.cmpi eq, %1, %6 : vector<1x576xi32>
    %c0_3 = arith.constant 0 : index
    %c0_4 = arith.constant 0 : index
    %8 = vector.load %arg1[%c0_3, %c0_4] : memref<4x36xf32, #tpu.memory_space<vmem>>, vector<4x36xf32>
    %9 = vector.extract_strided_slice %0 {offsets = [0, 0], sizes = [4, 288], strides = [1, 1]} : vector<4x650xf32> to vector<4x288xf32>
    %10 = vector.extract_strided_slice %0 {offsets = [0, 324], sizes = [4, 288], strides = [1, 1]} : vector<4x650xf32> to vector<4x288xf32>
    %11 = tpu.concatenate %9, %10 in 1 : vector<4x288xf32>, vector<4x288xf32> -> vector<4x576xf32>
    %12 = vector.extract_strided_slice %0 {offsets = [0, 1], sizes = [4, 288], strides = [1, 1]} : vector<4x650xf32> to vector<4x288xf32>
    %13 = vector.extract_strided_slice %0 {offsets = [0, 325], sizes = [4, 288], strides = [1, 1]} : vector<4x650xf32> to vector<4x288xf32>
    %14 = tpu.concatenate %12, %13 in 1 : vector<4x288xf32>, vector<4x288xf32> -> vector<4x576xf32>
    %15 = vector.extract_strided_slice %0 {offsets = [0, 2], sizes = [4, 288], strides = [1, 1]} : vector<4x650xf32> to vector<4x288xf32>
    %16 = vector.extract_strided_slice %0 {offsets = [0, 326], sizes = [4, 288], strides = [1, 1]} : vector<4x650xf32> to vector<4x288xf32>
    %17 = tpu.concatenate %15, %16 in 1 : vector<4x288xf32>, vector<4x288xf32> -> vector<4x576xf32>
    %18 = vector.extract_strided_slice %0 {offsets = [0, 18], sizes = [4, 288], strides = [1, 1]} : vector<4x650xf32> to vector<4x288xf32>
    %19 = vector.extract_strided_slice %0 {offsets = [0, 342], sizes = [4, 288], strides = [1, 1]} : vector<4x650xf32> to vector<4x288xf32>
    %20 = tpu.concatenate %18, %19 in 1 : vector<4x288xf32>, vector<4x288xf32> -> vector<4x576xf32>
    %21 = vector.extract_strided_slice %0 {offsets = [0, 19], sizes = [4, 288], strides = [1, 1]} : vector<4x650xf32> to vector<4x288xf32>
    %22 = vector.extract_strided_slice %0 {offsets = [0, 343], sizes = [4, 288], strides = [1, 1]} : vector<4x650xf32> to vector<4x288xf32>
    %23 = tpu.concatenate %21, %22 in 1 : vector<4x288xf32>, vector<4x288xf32> -> vector<4x576xf32>
    %24 = vector.extract_strided_slice %0 {offsets = [0, 20], sizes = [4, 288], strides = [1, 1]} : vector<4x650xf32> to vector<4x288xf32>
    %25 = vector.extract_strided_slice %0 {offsets = [0, 344], sizes = [4, 288], strides = [1, 1]} : vector<4x650xf32> to vector<4x288xf32>
    %26 = tpu.concatenate %24, %25 in 1 : vector<4x288xf32>, vector<4x288xf32> -> vector<4x576xf32>
    %27 = vector.extract_strided_slice %0 {offsets = [0, 36], sizes = [4, 288], strides = [1, 1]} : vector<4x650xf32> to vector<4x288xf32>
    %28 = vector.extract_strided_slice %0 {offsets = [0, 360], sizes = [4, 288], strides = [1, 1]} : vector<4x650xf32> to vector<4x288xf32>
    %29 = tpu.concatenate %27, %28 in 1 : vector<4x288xf32>, vector<4x288xf32> -> vector<4x576xf32>
    %30 = vector.extract_strided_slice %0 {offsets = [0, 37], sizes = [4, 288], strides = [1, 1]} : vector<4x650xf32> to vector<4x288xf32>
    %31 = vector.extract_strided_slice %0 {offsets = [0, 361], sizes = [4, 288], strides = [1, 1]} : vector<4x650xf32> to vector<4x288xf32>
    %32 = tpu.concatenate %30, %31 in 1 : vector<4x288xf32>, vector<4x288xf32> -> vector<4x576xf32>
    %33 = vector.extract_strided_slice %0 {offsets = [0, 38], sizes = [4, 288], strides = [1, 1]} : vector<4x650xf32> to vector<4x288xf32>
    %34 = vector.extract_strided_slice %0 {offsets = [0, 362], sizes = [4, 288], strides = [1, 1]} : vector<4x650xf32> to vector<4x288xf32>
    %35 = tpu.concatenate %33, %34 in 1 : vector<4x288xf32>, vector<4x288xf32> -> vector<4x576xf32>
    %36 = tpu.concatenate %11, %14, %17, %20, %23, %26, %29, %32, %35 in 0 : vector<4x576xf32>, vector<4x576xf32>, vector<4x576xf32>, vector<4x576xf32>, vector<4x576xf32>, vector<4x576xf32>, vector<4x576xf32>, vector<4x576xf32>, vector<4x576xf32> -> vector<36x576xf32>
    %cst = arith.constant dense<0.000000e+00> : vector<4x576xf32>
    %37 = tpu.matmul %8, %36, %cst {dimension_numbers = #tpu.dot_dimension_numbers<[1], [0], [0], [1], [0, 0, 1, 1], [], []>} : vector<4x36xf32>, vector<36x576xf32>, vector<4x576xf32> -> vector<4x576xf32>
    %c0_5 = arith.constant 0 : index
    %c0_6 = arith.constant 0 : index
    %38 = vector.load %arg2[%c0_5, %c0_6] : memref<4x1xf32, #tpu.memory_space<vmem>>, vector<4x1xf32>
    %39 = vector.broadcast %38 : vector<4x1xf32> to vector<4x576xf32>
    %40 = arith.addf %37, %39 : vector<4x576xf32>
    %41 = vector.extract_strided_slice %40 {offsets = [0, 0], sizes = [4, 288], strides = [1, 1]} : vector<4x576xf32> to vector<4x288xf32>
    %42 = vector.extract_strided_slice %3 {offsets = [0, 0], sizes = [1, 288], strides = [1, 1]} : vector<1x576xi1> to vector<1x288xi1>
    %cst_7 = arith.constant 0.000000e+00 : f32
    %43 = vector.shape_cast %42 : vector<1x288xi1> to vector<1x288xi1>
    %44 = vector.broadcast %43 : vector<1x288xi1> to vector<4x288xi1>
    %45 = vector.broadcast %cst_7 : f32 to vector<4x288xf32>
    %46 = arith.select %44, %41, %45 : vector<4x288xi1>, vector<4x288xf32>
    %cst_8 = arith.constant dense<0.000000e+00> : vector<4xf32>
    %47 = vector.multi_reduction <add>, %46, %cst_8 [1] : vector<4x288xf32> to vector<4xf32>
    %48 = vector.shape_cast %47 : vector<4xf32> to vector<4x1xf32>
    %49 = arith.mulf %46, %41 : vector<4x288xf32>
    %cst_9 = arith.constant dense<0.000000e+00> : vector<4xf32>
    %50 = vector.multi_reduction <add>, %49, %cst_9 [1] : vector<4x288xf32> to vector<4xf32>
    %51 = vector.shape_cast %50 : vector<4xf32> to vector<4x1xf32>
    %cst_10 = arith.constant 3.906250e-03 : f32
    %52 = vector.broadcast %cst_10 : f32 to vector<4x1xf32>
    %53 = arith.mulf %48, %52 : vector<4x1xf32>
    %cst_11 = arith.constant 3.906250e-03 : f32
    %54 = vector.broadcast %cst_11 : f32 to vector<4x1xf32>
    %55 = arith.mulf %51, %54 : vector<4x1xf32>
    %56 = arith.mulf %53, %53 : vector<4x1xf32>
    %57 = arith.subf %55, %56 : vector<4x1xf32>
    %cst_12 = arith.constant 0.000000e+00 : f32
    %58 = vector.broadcast %cst_12 : f32 to vector<4x1xf32>
    %59 = arith.maximumf %57, %58 : vector<4x1xf32>
    %60 = vector.broadcast %53 : vector<4x1xf32> to vector<4x288xf32>
    %61 = arith.subf %41, %60 : vector<4x288xf32>
    %cst_13 = arith.constant 9.99999974E-6 : f32
    %62 = vector.broadcast %cst_13 : f32 to vector<4x1xf32>
    %63 = arith.addf %59, %62 : vector<4x1xf32>
    %64 = math.rsqrt %63 : vector<4x1xf32>
    %65 = vector.broadcast %64 : vector<4x1xf32> to vector<4x288xf32>
    %66 = arith.mulf %61, %65 : vector<4x288xf32>
    %67 = vector.extract_strided_slice %40 {offsets = [0, 288], sizes = [4, 288], strides = [1, 1]} : vector<4x576xf32> to vector<4x288xf32>
    %68 = vector.extract_strided_slice %3 {offsets = [0, 288], sizes = [1, 288], strides = [1, 1]} : vector<1x576xi1> to vector<1x288xi1>
    %cst_14 = arith.constant 0.000000e+00 : f32
    %69 = vector.shape_cast %68 : vector<1x288xi1> to vector<1x288xi1>
    %70 = vector.broadcast %69 : vector<1x288xi1> to vector<4x288xi1>
    %71 = vector.broadcast %cst_14 : f32 to vector<4x288xf32>
    %72 = arith.select %70, %67, %71 : vector<4x288xi1>, vector<4x288xf32>
    %cst_15 = arith.constant dense<0.000000e+00> : vector<4xf32>
    %73 = vector.multi_reduction <add>, %72, %cst_15 [1] : vector<4x288xf32> to vector<4xf32>
    %74 = vector.shape_cast %73 : vector<4xf32> to vector<4x1xf32>
    %75 = arith.mulf %72, %67 : vector<4x288xf32>
    %cst_16 = arith.constant dense<0.000000e+00> : vector<4xf32>
    %76 = vector.multi_reduction <add>, %75, %cst_16 [1] : vector<4x288xf32> to vector<4xf32>
    %77 = vector.shape_cast %76 : vector<4xf32> to vector<4x1xf32>
    %cst_17 = arith.constant 3.906250e-03 : f32
    %78 = vector.broadcast %cst_17 : f32 to vector<4x1xf32>
    %79 = arith.mulf %74, %78 : vector<4x1xf32>
    %cst_18 = arith.constant 3.906250e-03 : f32
    %80 = vector.broadcast %cst_18 : f32 to vector<4x1xf32>
    %81 = arith.mulf %77, %80 : vector<4x1xf32>
    %82 = arith.mulf %79, %79 : vector<4x1xf32>
    %83 = arith.subf %81, %82 : vector<4x1xf32>
    %cst_19 = arith.constant 0.000000e+00 : f32
    %84 = vector.broadcast %cst_19 : f32 to vector<4x1xf32>
    %85 = arith.maximumf %83, %84 : vector<4x1xf32>
    %86 = vector.broadcast %79 : vector<4x1xf32> to vector<4x288xf32>
    %87 = arith.subf %67, %86 : vector<4x288xf32>
    %cst_20 = arith.constant 9.99999974E-6 : f32
    %88 = vector.broadcast %cst_20 : f32 to vector<4x1xf32>
    %89 = arith.addf %85, %88 : vector<4x1xf32>
    %90 = math.rsqrt %89 : vector<4x1xf32>
    %91 = vector.broadcast %90 : vector<4x1xf32> to vector<4x288xf32>
    %92 = arith.mulf %87, %91 : vector<4x288xf32>
    %93 = tpu.concatenate %66, %92 in 1 : vector<4x288xf32>, vector<4x288xf32> -> vector<4x576xf32>
    %cst_21 = arith.constant 0.000000e+00 : f32
    %94 = vector.broadcast %cst_21 : f32 to vector<4x576xf32>
    %95 = arith.maximumf %93, %94 : vector<4x576xf32>
    %96 = vector.extract_strided_slice %95 {offsets = [0, 575], sizes = [4, 1], strides = [1, 1]} : vector<4x576xf32> to vector<4x1xf32>
    %97 = vector.extract_strided_slice %95 {offsets = [0, 0], sizes = [4, 575], strides = [1, 1]} : vector<4x576xf32> to vector<4x575xf32>
    %98 = tpu.concatenate %96, %97 in 1 : vector<4x1xf32>, vector<4x575xf32> -> vector<4x576xf32>
    %99 = vector.extract_strided_slice %95 {offsets = [0, 1], sizes = [4, 575], strides = [1, 1]} : vector<4x576xf32> to vector<4x575xf32>
    %100 = vector.extract_strided_slice %95 {offsets = [0, 0], sizes = [4, 1], strides = [1, 1]} : vector<4x576xf32> to vector<4x1xf32>
    %101 = tpu.concatenate %99, %100 in 1 : vector<4x575xf32>, vector<4x1xf32> -> vector<4x576xf32>
    %102 = vector.extract_strided_slice %95 {offsets = [0, 573], sizes = [4, 3], strides = [1, 1]} : vector<4x576xf32> to vector<4x3xf32>
    %103 = vector.extract_strided_slice %95 {offsets = [0, 0], sizes = [4, 573], strides = [1, 1]} : vector<4x576xf32> to vector<4x573xf32>
    %104 = tpu.concatenate %102, %103 in 1 : vector<4x3xf32>, vector<4x573xf32> -> vector<4x576xf32>
    %105 = vector.shape_cast %7 : vector<1x576xi1> to vector<1x576xi1>
    %106 = vector.broadcast %105 : vector<1x576xi1> to vector<4x576xi1>
    %107 = arith.select %106, %104, %98 : vector<4x576xi1>, vector<4x576xf32>
    %108 = vector.shape_cast %5 : vector<1x576xi1> to vector<1x576xi1>
    %109 = vector.broadcast %108 : vector<1x576xi1> to vector<4x576xi1>
    %110 = arith.select %109, %101, %107 : vector<4x576xi1>, vector<4x576xf32>
    %111 = vector.extract_strided_slice %110 {offsets = [0, 0], sizes = [4, 288], strides = [1, 1]} : vector<4x576xf32> to vector<4x288xf32>
    %112 = vector.extract_strided_slice %111 {offsets = [0, 18], sizes = [4, 18], strides = [1, 1]} : vector<4x288xf32> to vector<4x18xf32>
    %113 = vector.extract_strided_slice %111 {offsets = [0, 252], sizes = [4, 18], strides = [1, 1]} : vector<4x288xf32> to vector<4x18xf32>
    %114 = vector.extract_strided_slice %110 {offsets = [0, 288], sizes = [4, 288], strides = [1, 1]} : vector<4x576xf32> to vector<4x288xf32>
    %115 = vector.extract_strided_slice %114 {offsets = [0, 18], sizes = [4, 18], strides = [1, 1]} : vector<4x288xf32> to vector<4x18xf32>
    %116 = vector.extract_strided_slice %114 {offsets = [0, 252], sizes = [4, 18], strides = [1, 1]} : vector<4x288xf32> to vector<4x18xf32>
    %cst_22 = arith.constant 0.000000e+00 : f32
    %117 = vector.broadcast %cst_22 : f32 to vector<4x2xf32>
    %118 = tpu.concatenate %112, %111, %113, %115, %114, %116, %117 in 1 : vector<4x18xf32>, vector<4x288xf32>, vector<4x18xf32>, vector<4x18xf32>, vector<4x288xf32>, vector<4x18xf32>, vector<4x2xf32> -> vector<4x650xf32>
    %c0_23 = arith.constant 0 : index
    %c0_24 = arith.constant 0 : index
    %119 = vector.load %arg3[%c0_23, %c0_24] : memref<4x36xf32, #tpu.memory_space<vmem>>, vector<4x36xf32>
    %120 = vector.extract_strided_slice %118 {offsets = [0, 0], sizes = [4, 288], strides = [1, 1]} : vector<4x650xf32> to vector<4x288xf32>
    %121 = vector.extract_strided_slice %118 {offsets = [0, 324], sizes = [4, 288], strides = [1, 1]} : vector<4x650xf32> to vector<4x288xf32>
    %122 = tpu.concatenate %120, %121 in 1 : vector<4x288xf32>, vector<4x288xf32> -> vector<4x576xf32>
    %123 = vector.extract_strided_slice %118 {offsets = [0, 1], sizes = [4, 288], strides = [1, 1]} : vector<4x650xf32> to vector<4x288xf32>
    %124 = vector.extract_strided_slice %118 {offsets = [0, 325], sizes = [4, 288], strides = [1, 1]} : vector<4x650xf32> to vector<4x288xf32>
    %125 = tpu.concatenate %123, %124 in 1 : vector<4x288xf32>, vector<4x288xf32> -> vector<4x576xf32>
    %126 = vector.extract_strided_slice %118 {offsets = [0, 2], sizes = [4, 288], strides = [1, 1]} : vector<4x650xf32> to vector<4x288xf32>
    %127 = vector.extract_strided_slice %118 {offsets = [0, 326], sizes = [4, 288], strides = [1, 1]} : vector<4x650xf32> to vector<4x288xf32>
    %128 = tpu.concatenate %126, %127 in 1 : vector<4x288xf32>, vector<4x288xf32> -> vector<4x576xf32>
    %129 = vector.extract_strided_slice %118 {offsets = [0, 18], sizes = [4, 288], strides = [1, 1]} : vector<4x650xf32> to vector<4x288xf32>
    %130 = vector.extract_strided_slice %118 {offsets = [0, 342], sizes = [4, 288], strides = [1, 1]} : vector<4x650xf32> to vector<4x288xf32>
    %131 = tpu.concatenate %129, %130 in 1 : vector<4x288xf32>, vector<4x288xf32> -> vector<4x576xf32>
    %132 = vector.extract_strided_slice %118 {offsets = [0, 19], sizes = [4, 288], strides = [1, 1]} : vector<4x650xf32> to vector<4x288xf32>
    %133 = vector.extract_strided_slice %118 {offsets = [0, 343], sizes = [4, 288], strides = [1, 1]} : vector<4x650xf32> to vector<4x288xf32>
    %134 = tpu.concatenate %132, %133 in 1 : vector<4x288xf32>, vector<4x288xf32> -> vector<4x576xf32>
    %135 = vector.extract_strided_slice %118 {offsets = [0, 20], sizes = [4, 288], strides = [1, 1]} : vector<4x650xf32> to vector<4x288xf32>
    %136 = vector.extract_strided_slice %118 {offsets = [0, 344], sizes = [4, 288], strides = [1, 1]} : vector<4x650xf32> to vector<4x288xf32>
    %137 = tpu.concatenate %135, %136 in 1 : vector<4x288xf32>, vector<4x288xf32> -> vector<4x576xf32>
    %138 = vector.extract_strided_slice %118 {offsets = [0, 36], sizes = [4, 288], strides = [1, 1]} : vector<4x650xf32> to vector<4x288xf32>
    %139 = vector.extract_strided_slice %118 {offsets = [0, 360], sizes = [4, 288], strides = [1, 1]} : vector<4x650xf32> to vector<4x288xf32>
    %140 = tpu.concatenate %138, %139 in 1 : vector<4x288xf32>, vector<4x288xf32> -> vector<4x576xf32>
    %141 = vector.extract_strided_slice %118 {offsets = [0, 37], sizes = [4, 288], strides = [1, 1]} : vector<4x650xf32> to vector<4x288xf32>
    %142 = vector.extract_strided_slice %118 {offsets = [0, 361], sizes = [4, 288], strides = [1, 1]} : vector<4x650xf32> to vector<4x288xf32>
    %143 = tpu.concatenate %141, %142 in 1 : vector<4x288xf32>, vector<4x288xf32> -> vector<4x576xf32>
    %144 = vector.extract_strided_slice %118 {offsets = [0, 38], sizes = [4, 288], strides = [1, 1]} : vector<4x650xf32> to vector<4x288xf32>
    %145 = vector.extract_strided_slice %118 {offsets = [0, 362], sizes = [4, 288], strides = [1, 1]} : vector<4x650xf32> to vector<4x288xf32>
    %146 = tpu.concatenate %144, %145 in 1 : vector<4x288xf32>, vector<4x288xf32> -> vector<4x576xf32>
    %147 = tpu.concatenate %122, %125, %128, %131, %134, %137, %140, %143, %146 in 0 : vector<4x576xf32>, vector<4x576xf32>, vector<4x576xf32>, vector<4x576xf32>, vector<4x576xf32>, vector<4x576xf32>, vector<4x576xf32>, vector<4x576xf32>, vector<4x576xf32> -> vector<36x576xf32>
    %cst_25 = arith.constant dense<0.000000e+00> : vector<4x576xf32>
    %148 = tpu.matmul %119, %147, %cst_25 {dimension_numbers = #tpu.dot_dimension_numbers<[1], [0], [0], [1], [0, 0, 1, 1], [], []>} : vector<4x36xf32>, vector<36x576xf32>, vector<4x576xf32> -> vector<4x576xf32>
    %c0_26 = arith.constant 0 : index
    %c0_27 = arith.constant 0 : index
    %149 = vector.load %arg4[%c0_26, %c0_27] : memref<4x1xf32, #tpu.memory_space<vmem>>, vector<4x1xf32>
    %150 = vector.broadcast %149 : vector<4x1xf32> to vector<4x576xf32>
    %151 = arith.addf %148, %150 : vector<4x576xf32>
    %152 = vector.extract_strided_slice %151 {offsets = [0, 0], sizes = [4, 288], strides = [1, 1]} : vector<4x576xf32> to vector<4x288xf32>
    %153 = vector.extract_strided_slice %3 {offsets = [0, 0], sizes = [1, 288], strides = [1, 1]} : vector<1x576xi1> to vector<1x288xi1>
    %cst_28 = arith.constant 0.000000e+00 : f32
    %154 = vector.shape_cast %153 : vector<1x288xi1> to vector<1x288xi1>
    %155 = vector.broadcast %154 : vector<1x288xi1> to vector<4x288xi1>
    %156 = vector.broadcast %cst_28 : f32 to vector<4x288xf32>
    %157 = arith.select %155, %152, %156 : vector<4x288xi1>, vector<4x288xf32>
    %cst_29 = arith.constant dense<0.000000e+00> : vector<4xf32>
    %158 = vector.multi_reduction <add>, %157, %cst_29 [1] : vector<4x288xf32> to vector<4xf32>
    %159 = vector.shape_cast %158 : vector<4xf32> to vector<4x1xf32>
    %160 = arith.mulf %157, %152 : vector<4x288xf32>
    %cst_30 = arith.constant dense<0.000000e+00> : vector<4xf32>
    %161 = vector.multi_reduction <add>, %160, %cst_30 [1] : vector<4x288xf32> to vector<4xf32>
    %162 = vector.shape_cast %161 : vector<4xf32> to vector<4x1xf32>
    %cst_31 = arith.constant 3.906250e-03 : f32
    %163 = vector.broadcast %cst_31 : f32 to vector<4x1xf32>
    %164 = arith.mulf %159, %163 : vector<4x1xf32>
    %cst_32 = arith.constant 3.906250e-03 : f32
    %165 = vector.broadcast %cst_32 : f32 to vector<4x1xf32>
    %166 = arith.mulf %162, %165 : vector<4x1xf32>
    %167 = arith.mulf %164, %164 : vector<4x1xf32>
    %168 = arith.subf %166, %167 : vector<4x1xf32>
    %cst_33 = arith.constant 0.000000e+00 : f32
    %169 = vector.broadcast %cst_33 : f32 to vector<4x1xf32>
    %170 = arith.maximumf %168, %169 : vector<4x1xf32>
    %171 = vector.broadcast %164 : vector<4x1xf32> to vector<4x288xf32>
    %172 = arith.subf %152, %171 : vector<4x288xf32>
    %cst_34 = arith.constant 9.99999974E-6 : f32
    %173 = vector.broadcast %cst_34 : f32 to vector<4x1xf32>
    %174 = arith.addf %170, %173 : vector<4x1xf32>
    %175 = math.rsqrt %174 : vector<4x1xf32>
    %176 = vector.broadcast %175 : vector<4x1xf32> to vector<4x288xf32>
    %177 = arith.mulf %172, %176 : vector<4x288xf32>
    %178 = vector.extract_strided_slice %151 {offsets = [0, 288], sizes = [4, 288], strides = [1, 1]} : vector<4x576xf32> to vector<4x288xf32>
    %179 = vector.extract_strided_slice %3 {offsets = [0, 288], sizes = [1, 288], strides = [1, 1]} : vector<1x576xi1> to vector<1x288xi1>
    %cst_35 = arith.constant 0.000000e+00 : f32
    %180 = vector.shape_cast %179 : vector<1x288xi1> to vector<1x288xi1>
    %181 = vector.broadcast %180 : vector<1x288xi1> to vector<4x288xi1>
    %182 = vector.broadcast %cst_35 : f32 to vector<4x288xf32>
    %183 = arith.select %181, %178, %182 : vector<4x288xi1>, vector<4x288xf32>
    %cst_36 = arith.constant dense<0.000000e+00> : vector<4xf32>
    %184 = vector.multi_reduction <add>, %183, %cst_36 [1] : vector<4x288xf32> to vector<4xf32>
    %185 = vector.shape_cast %184 : vector<4xf32> to vector<4x1xf32>
    %186 = arith.mulf %183, %178 : vector<4x288xf32>
    %cst_37 = arith.constant dense<0.000000e+00> : vector<4xf32>
    %187 = vector.multi_reduction <add>, %186, %cst_37 [1] : vector<4x288xf32> to vector<4xf32>
    %188 = vector.shape_cast %187 : vector<4xf32> to vector<4x1xf32>
    %cst_38 = arith.constant 3.906250e-03 : f32
    %189 = vector.broadcast %cst_38 : f32 to vector<4x1xf32>
    %190 = arith.mulf %185, %189 : vector<4x1xf32>
    %cst_39 = arith.constant 3.906250e-03 : f32
    %191 = vector.broadcast %cst_39 : f32 to vector<4x1xf32>
    %192 = arith.mulf %188, %191 : vector<4x1xf32>
    %193 = arith.mulf %190, %190 : vector<4x1xf32>
    %194 = arith.subf %192, %193 : vector<4x1xf32>
    %cst_40 = arith.constant 0.000000e+00 : f32
    %195 = vector.broadcast %cst_40 : f32 to vector<4x1xf32>
    %196 = arith.maximumf %194, %195 : vector<4x1xf32>
    %197 = vector.broadcast %190 : vector<4x1xf32> to vector<4x288xf32>
    %198 = arith.subf %178, %197 : vector<4x288xf32>
    %cst_41 = arith.constant 9.99999974E-6 : f32
    %199 = vector.broadcast %cst_41 : f32 to vector<4x1xf32>
    %200 = arith.addf %196, %199 : vector<4x1xf32>
    %201 = math.rsqrt %200 : vector<4x1xf32>
    %202 = vector.broadcast %201 : vector<4x1xf32> to vector<4x288xf32>
    %203 = arith.mulf %198, %202 : vector<4x288xf32>
    %204 = tpu.concatenate %177, %203 in 1 : vector<4x288xf32>, vector<4x288xf32> -> vector<4x576xf32>
    %205 = vector.extract_strided_slice %0 {offsets = [0, 19], sizes = [4, 288], strides = [1, 1]} : vector<4x650xf32> to vector<4x288xf32>
    %206 = vector.extract_strided_slice %0 {offsets = [0, 343], sizes = [4, 288], strides = [1, 1]} : vector<4x650xf32> to vector<4x288xf32>
    %207 = tpu.concatenate %205, %206 in 1 : vector<4x288xf32>, vector<4x288xf32> -> vector<4x576xf32>
    %208 = arith.addf %204, %207 : vector<4x576xf32>
    %c0_42 = arith.constant 0 : index
    %c0_43 = arith.constant 0 : index
    %209 = vector.load %arg6[%c0_42, %c0_43] : memref<4x576xf32, #tpu.memory_space<vmem>>, vector<4x576xf32>
    tpu.vector_store %arg6[%c0_42, %c0_43], %208 {strides = array<i32>} : memref<4x576xf32, #tpu.memory_space<vmem>>, vector<4x576xf32>,
    return
  }
}

</mosaic_0001>

<llo_original>
// kernel: ins_res_block.1
$region0: #{ins_res_block.1}
  #allocation0 [shape = 'u32[]', space=smem, size = 0x4, offset = 0x4, fixed_abs, tag = 'smem constant byte address 0x4 - core index']
  #allocation1 [shape = 'u32[72,128]{1,0:T(1,128)}', space=vmem, size = 0x9000, scoped, tag = 'internal scratch']
  %s0 = inlined_call_operand.vmem [shape: f32[4,650], index: 0, kind: input, shape index: {}]
  %s1 = inlined_call_operand.vmem [shape: f32[4,36], index: 1, kind: input, shape index: {}]
  %s2 = inlined_call_operand.vmem [shape: f32[4,1], index: 2, kind: input, shape index: {}]
  %s3 = inlined_call_operand.vmem [shape: f32[4,36], index: 3, kind: input, shape index: {}]
  %s4 = inlined_call_operand.vmem [shape: f32[4,1], index: 4, kind: input, shape index: {}]
  %s5 = inlined_call_operand.vmem [shape: s32[1,576], index: 5, kind: input, shape index: {}]
  %s6 = inlined_call_operand.vmem [shape: f32[4,576], index: 6, kind: output, shape index: {}]
  %s7 = sld [smem:[#allocation0]]
  $region34: #{ins_res_block.1} parent=0
    _
  %s9 = ssub.s32 1, %s7
  %s10 = scalar_select 0, %s9, %s7
  // Predicated region
  $region2: #{ins_res_block.1} parent=0 // pred_check
    _
  $region3: #{ins_res_block.1} parent=0 // pred_check_branch
    %12 = sbr.rel (0) target = $region5
  $region4: #{ins_res_block.1} parent=0 // pred_region
    _
  $region5: #{ins_res_block.1} parent=0 // pred_fallthru
    _
  // Predicated region
  $region6: #{ins_res_block.1} parent=0 // pred_check
    _
  $region7: #{ins_res_block.1} parent=0 // pred_check_branch
    %14 = sbr.rel (0) target = $region9
  $region8: #{ins_res_block.1} parent=0 // pred_region
    _
  $region9: #{ins_res_block.1} parent=0 // pred_fallthru
    _
  // Predicated region
  $region10: #{ins_res_block.1} parent=0 // pred_check
    _
  $region11: #{ins_res_block.1} parent=0 // pred_check_branch
    %16 = sbr.rel (0) target = $region13
  $region12: #{ins_res_block.1} parent=0 // pred_region
    _
  $region13: #{ins_res_block.1} parent=0 // pred_fallthru
    _
  // Predicated region
  $region14: #{ins_res_block.1} parent=0 // pred_check
    _
  $region15: #{ins_res_block.1} parent=0 // pred_check_branch
    %18 = sbr.rel (0) target = $region17
  $region16: #{ins_res_block.1} parent=0 // pred_region
    _
  $region17: #{ins_res_block.1} parent=0 // pred_fallthru
    _
  // Predicated region
  $region18: #{ins_res_block.1} parent=0 // pred_check
    _
  $region19: #{ins_res_block.1} parent=0 // pred_check_branch
    %20 = sbr.rel (0) target = $region21
  $region20: #{ins_res_block.1} parent=0 // pred_region
    _
  $region21: #{ins_res_block.1} parent=0 // pred_fallthru
    _
  // Predicated region
  $region22: #{ins_res_block.1} parent=0 // pred_check
    _
  $region23: #{ins_res_block.1} parent=0 // pred_check_branch
    %22 = sbr.rel (0) target = $region25
  $region24: #{ins_res_block.1} parent=0 // pred_region
    _
  $region25: #{ins_res_block.1} parent=0 // pred_fallthru
    _
  %v23 = vld [vmem:[%s0] sm:$0xff]
  %v24 = vld [vmem:[%s0 + $0x8] sm:$0xff]
  %v25 = vld [vmem:[%s0 + $0x10] sm:$0xff]
  %v26 = vld [vmem:[%s5] sm:$0x1f]
  %vm27 = vcmp.lt.s32.totalorder %v26, 16
  %vm28 = vcmp.eq.s32.totalorder %v26, 0
  %vm29 = vcmp.eq.s32.totalorder %v26, 17
  %v30 = vld [vmem:[%s1] sm:$0xf]
  %33 = vst [vmem:[#allocation1] ss:$2 sm:$0xff] %v23
  %s34 = scalar_lea.vmem [#allocation1], 16
  %35 = vst [vmem:[%s34] ss:$2 sm:$0xff] %v24
  %v36 = vld.sshfl [vmem:[#allocation1] sm:$0xff pattern:$0x75316420]
  %v37 = vld.sshfl [vmem:[#allocation1 + $0x8] sm:$0xff pattern:$0x75316420]
  %v38 = vld.sshfl [vmem:[#allocation1 + $0x10] sm:$0xff pattern:$0x75316420]
  %43 = vst [vmem:[#allocation1] ss:$2 sm:$0xff] %v24
  %s44 = scalar_lea.vmem [#allocation1], 16
  %45 = vst [vmem:[%s44] ss:$2 sm:$0xff] %v25
  %v46 = vld.sshfl [vmem:[#allocation1] sm:$0xff pattern:$0x75316420]
  %v47 = vld.sshfl [vmem:[#allocation1 + $0x8] sm:$0xff pattern:$0x75316420]
  %v48 = vld.sshfl [vmem:[#allocation1 + $0x10] sm:$0xff pattern:$0x75316420]
  %49 = vrot.lane.b32.xlu0 %v46, 92
  %v50 = vpop.permute.xlu0 %49
  %51 = vrot.lane.b32.xlu0 %v47, 92
  %v52 = vpop.permute.xlu0 %51
  %53 = vrot.lane.b32.xlu0 %v48, 92
  %v54 = vpop.permute.xlu0 %53
  %vm55 = vcmask 752640
  %v56 = vsel %vm55, %v50, %v52
  %v57 = vsel %vm55, %v52, %v54
  %vm61 = vcmask 261120
  %v62 = vsel %vm61, %v38, %v56
  %63 = vst [vmem:[#allocation1] ss:$2 sm:$0xff] %v23
  %s64 = scalar_lea.vmem [#allocation1], 16
  %65 = vst [vmem:[%s64] ss:$2 sm:$0xff] %v24
  %v66 = vld.sshfl [vmem:[#allocation1] sm:$0xff pattern:$0x75316420]
  %v67 = vld.sshfl [vmem:[#allocation1 + $0x8] sm:$0xff pattern:$0x75316420]
  %v68 = vld.sshfl [vmem:[#allocation1 + $0x10] sm:$0xff pattern:$0x75316420]
  %69 = vrot.lane.b32.xlu0 %v66, 127
  %v70 = vpop.permute.xlu0 %69
  %71 = vrot.lane.b32.xlu0 %v67, 127
  %v72 = vpop.permute.xlu0 %71
  %73 = vrot.lane.b32.xlu0 %v68, 127
  %v74 = vpop.permute.xlu0 %73
  %vm75 = vcmask 1039360
  %v76 = vsel %vm75, %v70, %v72
  %v77 = vsel %vm75, %v72, %v74
  %79 = vst [vmem:[#allocation1] ss:$2 sm:$0xff] %v24
  %s80 = scalar_lea.vmem [#allocation1], 16
  %81 = vst [vmem:[%s80] ss:$2 sm:$0xff] %v25
  %v82 = vld.sshfl [vmem:[#allocation1] sm:$0xff pattern:$0x75316420]
  %v83 = vld.sshfl [vmem:[#allocation1 + $0x8] sm:$0xff pattern:$0x75316420]
  %v84 = vld.sshfl [vmem:[#allocation1 + $0x10] sm:$0xff pattern:$0x75316420]
  %85 = vrot.lane.b32.xlu0 %v82, 91
  %v86 = vpop.permute.xlu0 %85
  %87 = vrot.lane.b32.xlu0 %v83, 91
  %v88 = vpop.permute.xlu0 %87
  %89 = vrot.lane.b32.xlu0 %v84, 91
  %v90 = vpop.permute.xlu0 %89
  %vm91 = vcmask 744448
  %v92 = vsel %vm91, %v86, %v88
  %v93 = vsel %vm91, %v88, %v90
  %v95 = vsel %vm61, %v74, %v92
  %96 = vst [vmem:[#allocation1] ss:$2 sm:$0xff] %v23
  %s97 = scalar_lea.vmem [#allocation1], 16
  %98 = vst [vmem:[%s97] ss:$2 sm:$0xff] %v24
  %v99 = vld.sshfl [vmem:[#allocation1] sm:$0xff pattern:$0x75316420]
  %v100 = vld.sshfl [vmem:[#allocation1 + $0x8] sm:$0xff pattern:$0x75316420]
  %v101 = vld.sshfl [vmem:[#allocation1 + $0x10] sm:$0xff pattern:$0x75316420]
  %102 = vrot.lane.b32.xlu0 %v99, 126
  %v103 = vpop.permute.xlu0 %102
  %104 = vrot.lane.b32.xlu0 %v100, 126
  %v105 = vpop.permute.xlu0 %104
  %106 = vrot.lane.b32.xlu0 %v101, 126
  %v107 = vpop.permute.xlu0 %106
  %vm108 = vcmask 1031168
  %v109 = vsel %vm108, %v103, %v105
  %v110 = vsel %vm108, %v105, %v107
  %114 = vst [vmem:[#allocation1] ss:$2 sm:$0xff] %v24
  %s115 = scalar_lea.vmem [#allocation1], 16
  %116 = vst [vmem:[%s115] ss:$2 sm:$0xff] %v25
  %v117 = vld.sshfl [vmem:[#allocation1] sm:$0xff pattern:$0x75316420]
  %v118 = vld.sshfl [vmem:[#allocation1 + $0x8] sm:$0xff pattern:$0x75316420]
  %v119 = vld.sshfl [vmem:[#allocation1 + $0x10] sm:$0xff pattern:$0x75316420]
  %120 = vrot.lane.b32.xlu0 %v117, 90
  %v121 = vpop.permute.xlu0 %120
  %122 = vrot.lane.b32.xlu0 %v118, 90
  %v123 = vpop.permute.xlu0 %122
  %124 = vrot.lane.b32.xlu0 %v119, 90
  %v125 = vpop.permute.xlu0 %124
  %vm126 = vcmask 736256
  %v127 = vsel %vm126, %v121, %v123
  %v128 = vsel %vm126, %v123, %v125
  %v132 = vsel %vm61, %v107, %v127
  %133 = vst [vmem:[#allocation1] ss:$2 sm:$0xff] %v23
  %s134 = scalar_lea.vmem [#allocation1], 16
  %135 = vst [vmem:[%s134] ss:$2 sm:$0xff] %v24
  %v136 = vld.sshfl [vmem:[#allocation1] sm:$0xff pattern:$0x75316420]
  %v137 = vld.sshfl [vmem:[#allocation1 + $0x8] sm:$0xff pattern:$0x75316420]
  %v138 = vld.sshfl [vmem:[#allocation1 + $0x10] sm:$0xff pattern:$0x75316420]
  %139 = vrot.lane.b32.xlu0 %v136, 110
  %v140 = vpop.permute.xlu0 %139
  %141 = vrot.lane.b32.xlu0 %v137, 110
  %v142 = vpop.permute.xlu0 %141
  %143 = vrot.lane.b32.xlu0 %v138, 110
  %v144 = vpop.permute.xlu0 %143
  %vm145 = vcmask 900096
  %v146 = vsel %vm145, %v140, %v142
  %v147 = vsel %vm145, %v142, %v144
  %149 = vst [vmem:[#allocation1] ss:$2 sm:$0xff] %v24
  %s150 = scalar_lea.vmem [#allocation1], 16
  %151 = vst [vmem:[%s150] ss:$2 sm:$0xff] %v25
  %v152 = vld.sshfl [vmem:[#allocation1] sm:$0xff pattern:$0x75316420]
  %v153 = vld.sshfl [vmem:[#allocation1 + $0x8] sm:$0xff pattern:$0x75316420]
  %v154 = vld.sshfl [vmem:[#allocation1 + $0x10] sm:$0xff pattern:$0x75316420]
  %155 = vrot.lane.b32.xlu0 %v152, 74
  %v156 = vpop.permute.xlu0 %155
  %157 = vrot.lane.b32.xlu0 %v153, 74
  %v158 = vpop.permute.xlu0 %157
  %159 = vrot.lane.b32.xlu0 %v154, 74
  %v160 = vpop.permute.xlu0 %159
  %vm161 = vcmask 605184
  %v162 = vsel %vm161, %v156, %v158
  %v163 = vsel %vm161, %v158, %v160
  %v165 = vsel %vm61, %v144, %v162
  %166 = vst [vmem:[#allocation1] ss:$2 sm:$0xff] %v23
  %s167 = scalar_lea.vmem [#allocation1], 16
  %168 = vst [vmem:[%s167] ss:$2 sm:$0xff] %v24
  %v169 = vld.sshfl [vmem:[#allocation1] sm:$0xff pattern:$0x75316420]
  %v170 = vld.sshfl [vmem:[#allocation1 + $0x8] sm:$0xff pattern:$0x75316420]
  %v171 = vld.sshfl [vmem:[#allocation1 + $0x10] sm:$0xff pattern:$0x75316420]
  %172 = vrot.lane.b32.xlu0 %v169, 109
  %v173 = vpop.permute.xlu0 %172
  %174 = vrot.lane.b32.xlu0 %v170, 109
  %v175 = vpop.permute.xlu0 %174
  %176 = vrot.lane.b32.xlu0 %v171, 109
  %v177 = vpop.permute.xlu0 %176
  %vm178 = vcmask 891904
  %v179 = vsel %vm178, %v173, %v175
  %v180 = vsel %vm178, %v175, %v177
  %184 = vst [vmem:[#allocation1] ss:$2 sm:$0xff] %v24
  %s185 = scalar_lea.vmem [#allocation1], 16
  %186 = vst [vmem:[%s185] ss:$2 sm:$0xff] %v25
  %v187 = vld.sshfl [vmem:[#allocation1] sm:$0xff pattern:$0x75316420]
  %v188 = vld.sshfl [vmem:[#allocation1 + $0x8] sm:$0xff pattern:$0x75316420]
  %v189 = vld.sshfl [vmem:[#allocation1 + $0x10] sm:$0xff pattern:$0x75316420]
  %190 = vrot.lane.b32.xlu0 %v187, 73
  %v191 = vpop.permute.xlu0 %190
  %192 = vrot.lane.b32.xlu0 %v188, 73
  %v193 = vpop.permute.xlu0 %192
  %194 = vrot.lane.b32.xlu0 %v189, 73
  %v195 = vpop.permute.xlu0 %194
  %vm196 = vcmask 596992
  %v197 = vsel %vm196, %v191, %v193
  %v198 = vsel %vm196, %v193, %v195
  %v202 = vsel %vm61, %v177, %v197
  %203 = vst [vmem:[#allocation1] ss:$2 sm:$0xff] %v23
  %s204 = scalar_lea.vmem [#allocation1], 16
  %205 = vst [vmem:[%s204] ss:$2 sm:$0xff] %v24
  %v206 = vld.sshfl [vmem:[#allocation1] sm:$0xff pattern:$0x75316420]
  %v207 = vld.sshfl [vmem:[#allocation1 + $0x8] sm:$0xff pattern:$0x75316420]
  %v208 = vld.sshfl [vmem:[#allocation1 + $0x10] sm:$0xff pattern:$0x75316420]
  %209 = vrot.lane.b32.xlu0 %v206, 108
  %v210 = vpop.permute.xlu0 %209
  %211 = vrot.lane.b32.xlu0 %v207, 108
  %v212 = vpop.permute.xlu0 %211
  %213 = vrot.lane.b32.xlu0 %v208, 108
  %v214 = vpop.permute.xlu0 %213
  %vm215 = vcmask 883712
  %v216 = vsel %vm215, %v210, %v212
  %v217 = vsel %vm215, %v212, %v214
  %219 = vst [vmem:[#allocation1] ss:$2 sm:$0xff] %v24
  %s220 = scalar_lea.vmem [#allocation1], 16
  %221 = vst [vmem:[%s220] ss:$2 sm:$0xff] %v25
  %v222 = vld.sshfl [vmem:[#allocation1] sm:$0xff pattern:$0x75316420]
  %v223 = vld.sshfl [vmem:[#allocation1 + $0x8] sm:$0xff pattern:$0x75316420]
  %v224 = vld.sshfl [vmem:[#allocation1 + $0x10] sm:$0xff pattern:$0x75316420]
  %225 = vrot.lane.b32.xlu0 %v222, 72
  %v226 = vpop.permute.xlu0 %225
  %227 = vrot.lane.b32.xlu0 %v223, 72
  %v228 = vpop.permute.xlu0 %227
  %229 = vrot.lane.b32.xlu0 %v224, 72
  %v230 = vpop.permute.xlu0 %229
  %vm231 = vcmask 588800
  %v232 = vsel %vm231, %v226, %v228
  %v233 = vsel %vm231, %v228, %v230
  %v235 = vsel %vm61, %v214, %v232
  %236 = vst [vmem:[#allocation1] ss:$2 sm:$0xff] %v23
  %s237 = scalar_lea.vmem [#allocation1], 16
  %238 = vst [vmem:[%s237] ss:$2 sm:$0xff] %v24
  %v239 = vld.sshfl [vmem:[#allocation1] sm:$0xff pattern:$0x75316420]
  %v240 = vld.sshfl [vmem:[#allocation1 + $0x8] sm:$0xff pattern:$0x75316420]
  %v241 = vld.sshfl [vmem:[#allocation1 + $0x10] sm:$0xff pattern:$0x75316420]
  %242 = vrot.lane.b32.xlu0 %v239, 92
  %v243 = vpop.permute.xlu0 %242
  %244 = vrot.lane.b32.xlu0 %v240, 92
  %v245 = vpop.permute.xlu0 %244
  %246 = vrot.lane.b32.xlu0 %v241, 92
  %v247 = vpop.permute.xlu0 %246
  %v248 = vsel %vm55, %v243, %v245
  %v249 = vsel %vm55, %v245, %v247
  %253 = vst [vmem:[#allocation1] ss:$2 sm:$0xff] %v24
  %s254 = scalar_lea.vmem [#allocation1], 16
  %255 = vst [vmem:[%s254] ss:$2 sm:$0xff] %v25
  %v256 = vld.sshfl [vmem:[#allocation1] sm:$0xff pattern:$0x75316420]
  %v257 = vld.sshfl [vmem:[#allocation1 + $0x8] sm:$0xff pattern:$0x75316420]
  %v258 = vld.sshfl [vmem:[#allocation1 + $0x10] sm:$0xff pattern:$0x75316420]
  %v259 = vld.sshfl [vmem:[#allocation1 + $0x18] sm:$0xff pattern:$0x75316420]
  %260 = vrot.lane.b32.xlu0 %v256, 56
  %v261 = vpop.permute.xlu0 %260
  %262 = vrot.lane.b32.xlu0 %v257, 56
  %v263 = vpop.permute.xlu0 %262
  %264 = vrot.lane.b32.xlu0 %v258, 56
  %v265 = vpop.permute.xlu0 %264
  %266 = vrot.lane.b32.xlu0 %v259, 56
  %v267 = vpop.permute.xlu0 %266
  %vm268 = vcmask 457728
  %v269 = vsel %vm268, %v261, %v263
  %v270 = vsel %vm268, %v263, %v265
  %v271 = vsel %vm268, %v265, %v267
  %v275 = vsel %vm61, %v247, %v269
  %276 = vst [vmem:[#allocation1] ss:$2 sm:$0xff] %v23
  %s277 = scalar_lea.vmem [#allocation1], 16
  %278 = vst [vmem:[%s277] ss:$2 sm:$0xff] %v24
  %v279 = vld.sshfl [vmem:[#allocation1] sm:$0xff pattern:$0x75316420]
  %v280 = vld.sshfl [vmem:[#allocation1 + $0x8] sm:$0xff pattern:$0x75316420]
  %v281 = vld.sshfl [vmem:[#allocation1 + $0x10] sm:$0xff pattern:$0x75316420]
  %282 = vrot.lane.b32.xlu0 %v279, 91
  %v283 = vpop.permute.xlu0 %282
  %284 = vrot.lane.b32.xlu0 %v280, 91
  %v285 = vpop.permute.xlu0 %284
  %286 = vrot.lane.b32.xlu0 %v281, 91
  %v287 = vpop.permute.xlu0 %286
  %v288 = vsel %vm91, %v283, %v285
  %v289 = vsel %vm91, %v285, %v287
  %291 = vst [vmem:[#allocation1] ss:$2 sm:$0xff] %v24
  %s292 = scalar_lea.vmem [#allocation1], 16
  %293 = vst [vmem:[%s292] ss:$2 sm:$0xff] %v25
  %v294 = vld.sshfl [vmem:[#allocation1] sm:$0xff pattern:$0x75316420]
  %v295 = vld.sshfl [vmem:[#allocation1 + $0x8] sm:$0xff pattern:$0x75316420]
  %v296 = vld.sshfl [vmem:[#allocation1 + $0x10] sm:$0xff pattern:$0x75316420]
  %v297 = vld.sshfl [vmem:[#allocation1 + $0x18] sm:$0xff pattern:$0x75316420]
  %298 = vrot.lane.b32.xlu0 %v294, 55
  %v299 = vpop.permute.xlu0 %298
  %300 = vrot.lane.b32.xlu0 %v295, 55
  %v301 = vpop.permute.xlu0 %300
  %302 = vrot.lane.b32.xlu0 %v296, 55
  %v303 = vpop.permute.xlu0 %302
  %304 = vrot.lane.b32.xlu0 %v297, 55
  %v305 = vpop.permute.xlu0 %304
  %vm306 = vcmask 449536
  %v307 = vsel %vm306, %v299, %v301
  %v308 = vsel %vm306, %v301, %v303
  %v309 = vsel %vm306, %v303, %v305
  %v311 = vsel %vm61, %v287, %v307
  %312 = vst [vmem:[#allocation1] ss:$2 sm:$0xff] %v23
  %s313 = scalar_lea.vmem [#allocation1], 16
  %314 = vst [vmem:[%s313] ss:$2 sm:$0xff] %v24
  %v315 = vld.sshfl [vmem:[#allocation1] sm:$0xff pattern:$0x75316420]
  %v316 = vld.sshfl [vmem:[#allocation1 + $0x8] sm:$0xff pattern:$0x75316420]
  %v317 = vld.sshfl [vmem:[#allocation1 + $0x10] sm:$0xff pattern:$0x75316420]
  %318 = vrot.lane.b32.xlu0 %v315, 90
  %v319 = vpop.permute.xlu0 %318
  %320 = vrot.lane.b32.xlu0 %v316, 90
  %v321 = vpop.permute.xlu0 %320
  %322 = vrot.lane.b32.xlu0 %v317, 90
  %v323 = vpop.permute.xlu0 %322
  %v324 = vsel %vm126, %v319, %v321
  %v325 = vsel %vm126, %v321, %v323
  %327 = vst [vmem:[#allocation1] ss:$2 sm:$0xff] %v24
  %s328 = scalar_lea.vmem [#allocation1], 16
  %329 = vst [vmem:[%s328] ss:$2 sm:$0xff] %v25
  %v330 = vld.sshfl [vmem:[#allocation1] sm:$0xff pattern:$0x75316420]
  %v331 = vld.sshfl [vmem:[#allocation1 + $0x8] sm:$0xff pattern:$0x75316420]
  %v332 = vld.sshfl [vmem:[#allocation1 + $0x10] sm:$0xff pattern:$0x75316420]
  %v333 = vld.sshfl [vmem:[#allocation1 + $0x18] sm:$0xff pattern:$0x75316420]
  %334 = vrot.lane.b32.xlu0 %v330, 54
  %v335 = vpop.permute.xlu0 %334
  %336 = vrot.lane.b32.xlu0 %v331, 54
  %v337 = vpop.permute.xlu0 %336
  %338 = vrot.lane.b32.xlu0 %v332, 54
  %v339 = vpop.permute.xlu0 %338
  %340 = vrot.lane.b32.xlu0 %v333, 54
  %v341 = vpop.permute.xlu0 %340
  %vm342 = vcmask 441344
  %v343 = vsel %vm342, %v335, %v337
  %v344 = vsel %vm342, %v337, %v339
  %v345 = vsel %vm342, %v339, %v341
  %v347 = vsel %vm61, %v323, %v343
  %v349 = vrot.slane %v76, 4
  %v350 = vrot.slane %v77, 4
  %v351 = vrot.slane %v95, 4
  %v352 = vrot.slane %v93, 4
  %v353 = vrot.slane %v90, 4
  %v360 = vrot.slane %v146, 4
  %v361 = vrot.slane %v147, 4
  %v362 = vrot.slane %v165, 4
  %v363 = vrot.slane %v163, 4
  %v364 = vrot.slane %v160, 4
  %v371 = vrot.slane %v216, 4
  %v372 = vrot.slane %v217, 4
  %v373 = vrot.slane %v235, 4
  %v374 = vrot.slane %v233, 4
  %v375 = vrot.slane %v230, 4
  %v382 = vrot.slane %v288, 4
  %v383 = vrot.slane %v289, 4
  %v384 = vrot.slane %v311, 4
  %v385 = vrot.slane %v308, 4
  %v386 = vrot.slane %v309, 4
  %vm392 = vcmask 1043456
  %v393 = vsel %vm392, %v36, %v349
  %v394 = vsel %vm392, %v37, %v350
  %v395 = vsel %vm392, %v62, %v351
  %v396 = vsel %vm392, %v57, %v352
  %v397 = vsel %vm392, %v54, %v353
  %v398 = vsel %vm392, %v109, %v360
  %v399 = vsel %vm392, %v110, %v361
  %v400 = vsel %vm392, %v132, %v362
  %v401 = vsel %vm392, %v128, %v363
  %v402 = vsel %vm392, %v125, %v364
  %v403 = vsel %vm392, %v179, %v371
  %v404 = vsel %vm392, %v180, %v372
  %v405 = vsel %vm392, %v202, %v373
  %v406 = vsel %vm392, %v198, %v374
  %v407 = vsel %vm392, %v195, %v375
  %v408 = vsel %vm392, %v248, %v382
  %v409 = vsel %vm392, %v249, %v383
  %v410 = vsel %vm392, %v275, %v384
  %v411 = vsel %vm392, %v270, %v385
  %v412 = vsel %vm392, %v271, %v386
  %v413 = vld [vmem:[%s2] sm:$0xf]
  %415 = vset.pattern.permute.xlu0 0
  %416 = vperm.xlu0 %415, %v413
  %v417 = vpop.permute.xlu0 %416
  %vm419 = vcmask 293888
  %v421 = vsel %vm419, %v30, 0
  %v423 = vsel %vm392, %v324, 0
  %v425 = vsel %vm392, %v325, 0
  %v428 = vsel %vm392, %v347, 0
  %v430 = vsel %vm392, %v344, 0
  %v432 = vsel %vm392, %v345, 0
  %434 = vmatpush.msra.mxu0 0.0
  %435 = vmatpush.msra.mxu0 0.0
  %436 = vmatpush.msra.mxu0 0.0
  %437 = vmatpush.msra.mxu0 0.0
  %438 = vmatpush.msra.mxu0 0.0
  %439 = vmatpush.msra.mxu0 0.0
  %440 = vmatpush.msra.mxu0 0.0
  %441 = vmatpush.msra.mxu0 0.0
  %442 = vmatpush.msra.mxu0 0.0
  %443 = vmatpush.msra.mxu0 0.0
  %444 = vmatpush.msra.mxu0 0.0
  %445 = vmatpush.msra.mxu0 %v423
  %446 = vmatpush.msra.mxu0 %v408
  %447 = vmatpush.msra.mxu0 %v403
  %448 = vmatpush.msra.mxu0 %v398
  %449 = vmatpush.msra.mxu0 %v393
  %450 = vmatmul.f32.gmra.mxu0 %v421
  %v451 = vpop.f32.mrf.mxu0
  %v452 = vadd.f32 %v417, %v451
  %453 = vdwg.mxu0
  %454 = vmatpush.msra.mxu0 0.0
  %455 = vmatpush.msra.mxu0 0.0
  %456 = vmatpush.msra.mxu0 0.0
  %457 = vmatpush.msra.mxu0 0.0
  %458 = vmatpush.msra.mxu0 0.0
  %459 = vmatpush.msra.mxu0 0.0
  %460 = vmatpush.msra.mxu0 0.0
  %461 = vmatpush.msra.mxu0 0.0
  %462 = vmatpush.msra.mxu0 0.0
  %463 = vmatpush.msra.mxu0 0.0
  %464 = vmatpush.msra.mxu0 0.0
  %465 = vmatpush.msra.mxu0 %v425
  %466 = vmatpush.msra.mxu0 %v409
  %467 = vmatpush.msra.mxu0 %v404
  %468 = vmatpush.msra.mxu0 %v399
  %469 = vmatpush.msra.mxu0 %v394
  %470 = vmatmul.f32.gmra.mxu0 %v421
  %v471 = vpop.f32.mrf.mxu0
  %v472 = vadd.f32 %v417, %v471
  %473 = vdwg.mxu0
  %474 = vmatpush.msra.mxu0 0.0
  %475 = vmatpush.msra.mxu0 0.0
  %476 = vmatpush.msra.mxu0 0.0
  %477 = vmatpush.msra.mxu0 0.0
  %478 = vmatpush.msra.mxu0 0.0
  %479 = vmatpush.msra.mxu0 0.0
  %480 = vmatpush.msra.mxu0 0.0
  %481 = vmatpush.msra.mxu0 0.0
  %482 = vmatpush.msra.mxu0 0.0
  %483 = vmatpush.msra.mxu0 0.0
  %484 = vmatpush.msra.mxu0 0.0
  %485 = vmatpush.msra.mxu0 %v428
  %486 = vmatpush.msra.mxu0 %v410
  %487 = vmatpush.msra.mxu0 %v405
  %488 = vmatpush.msra.mxu0 %v400
  %489 = vmatpush.msra.mxu0 %v395
  %490 = vmatmul.f32.gmra.mxu0 %v421
  %v491 = vpop.f32.mrf.mxu0
  %v492 = vadd.f32 %v417, %v491
  %493 = vdwg.mxu0
  %494 = vmatpush.msra.mxu0 0.0
  %495 = vmatpush.msra.mxu0 0.0
  %496 = vmatpush.msra.mxu0 0.0
  %497 = vmatpush.msra.mxu0 0.0
  %498 = vmatpush.msra.mxu0 0.0
  %499 = vmatpush.msra.mxu0 0.0
  %500 = vmatpush.msra.mxu0 0.0
  %501 = vmatpush.msra.mxu0 0.0
  %502 = vmatpush.msra.mxu0 0.0
  %503 = vmatpush.msra.mxu0 0.0
  %504 = vmatpush.msra.mxu0 0.0
  %505 = vmatpush.msra.mxu0 %v430
  %506 = vmatpush.msra.mxu0 %v411
  %507 = vmatpush.msra.mxu0 %v406
  %508 = vmatpush.msra.mxu0 %v401
  %509 = vmatpush.msra.mxu0 %v396
  %510 = vmatmul.f32.gmra.mxu0 %v421
  %v511 = vpop.f32.mrf.mxu0
  %v512 = vadd.f32 %v417, %v511
  %513 = vdwg.mxu0
  %514 = vmatpush.msra.mxu0 0.0
  %515 = vmatpush.msra.mxu0 0.0
  %516 = vmatpush.msra.mxu0 0.0
  %517 = vmatpush.msra.mxu0 0.0
  %518 = vmatpush.msra.mxu0 0.0
  %519 = vmatpush.msra.mxu0 0.0
  %520 = vmatpush.msra.mxu0 0.0
  %521 = vmatpush.msra.mxu0 0.0
  %522 = vmatpush.msra.mxu0 0.0
  %523 = vmatpush.msra.mxu0 0.0
  %524 = vmatpush.msra.mxu0 0.0
  %525 = vmatpush.msra.mxu0 %v432
  %526 = vmatpush.msra.mxu0 %v412
  %527 = vmatpush.msra.mxu0 %v407
  %528 = vmatpush.msra.mxu0 %v402
  %529 = vmatpush.msra.mxu0 %v397
  %530 = vmatmul.f32.gmra.mxu0 %v421
  %v531 = vpop.f32.mrf.mxu0
  %v532 = vadd.f32 %v417, %v531
  %533 = vdwg.mxu0
  %v534 = vsel %vm27, 1, 0
  %v535 = vperm.slane %v534, 0
  %v536 = vperm.slane %v534, 1
  %v537 = vperm.slane %v534, 2
  %vm538 = vcmp.eq.s32.totalorder %v535, 1
  %vm539 = vcmp.eq.s32.totalorder %v536, 1
  %vm540 = vcmp.eq.s32.totalorder %v537, 1
  %v541 = vsel %vm538, %v452, 0.0
  %v542 = vsel %vm539, %v472, 0.0
  %v543 = vsel %vm540, %v492, 0.0
  %v544 = vsel %vm392, %v541, 0.0
  %v545 = vsel %vm392, %v542, 0.0
  %v546 = vadd.f32 %v544, %v545
  %vm547 = vcmask 257024
  %v548 = vsel %vm547, %v543, 0.0
  %v549 = vadd.f32 %v546, %v548
  %550 = vadd.xlane.f32.xlu0 %v549
  %v551 = vpop.xlane.xlu0 %550
  %v552 = vmul.f32 %v541, %v452
  %v553 = vmul.f32 %v542, %v472
  %v554 = vmul.f32 %v543, %v492
  %v555 = vsel %vm392, %v552, 0.0
  %v556 = vsel %vm392, %v553, 0.0
  %v557 = vadd.f32 %v555, %v556
  %v558 = vsel %vm547, %v554, 0.0
  %v559 = vadd.f32 %v557, %v558
  %560 = vadd.xlane.f32.xlu0 %v559
  %v561 = vpop.xlane.xlu0 %560
  %v562 = vmul.f32 %v551, 0.00390625
  %v563 = vmul.f32 %v561, 0.00390625
  %v564 = vmul.f32 %v562, %v562
  %v565 = vsub.f32 %v563, %v564
  %v566 = vmax.f32 %v565, 0.0
  %v567 = vsub.f32 %v452, %v562
  %v568 = vsub.f32 %v472, %v562
  %v569 = vsub.f32 %v492, %v562
  %v570 = vadd.f32 %v566, 1e-05
  %v571 = vrsqrt.pop %v570
  %v572 = vmul.f32 %v571, %v570
  %v573 = vmul.f32 %v572, %v571
  %v574 = vmul.f32 0.5, %v573
  %v575 = vsub.f32 1.5, %v574
  %v576 = vmul.f32 %v571, %v575
  %vm577 = vweird.f32 %v570
  %vm578 = vweird.f32 %v571
  %vm579 = vmor %vm577, %vm578
  %v580 = vsel %vm579, %v571, %v576
  %v581 = vmul.f32 %v567, %v580
  %v582 = vmul.f32 %v568, %v580
  %v583 = vmul.f32 %v569, %v580
  %584 = vrot.lane.b32.xlu0 %v534, 96
  %v585 = vpop.permute.xlu0 %584
  %v586 = vrot.slane %v585, 2
  %v587 = vrot.slane %v585, 3
  %vm588 = vcmask 785408
  %v589 = vsel %vm588, %v586, %v587
  %vm590 = vcmp.ne.s32.totalorder %v589, 0
  %v591 = vsel %vm590, 1, 0
  %v592 = vperm.slane %v591, 0
  %v593 = vperm.slane %v591, 1
  %v594 = vperm.slane %v591, 2
  %vm595 = vcmp.eq.s32.totalorder %v592, 1
  %vm596 = vcmp.eq.s32.totalorder %v593, 1
  %vm597 = vcmp.eq.s32.totalorder %v594, 1
  %601 = vrot.lane.b32.xlu0 %v492, 96
  %v602 = vpop.permute.xlu0 %601
  %603 = vrot.lane.b32.xlu0 %v512, 96
  %v604 = vpop.permute.xlu0 %603
  %605 = vrot.lane.b32.xlu0 %v532, 96
  %v606 = vpop.permute.xlu0 %605
  %v607 = vsel %vm588, %v602, %v604
  %v608 = vsel %vm588, %v604, %v606
  %v612 = vsel %vm595, %v607, 0.0
  %v613 = vsel %vm596, %v608, 0.0
  %v614 = vsel %vm597, %v606, 0.0
  %v615 = vsel %vm392, %v612, 0.0
  %v616 = vsel %vm392, %v613, 0.0
  %v617 = vadd.f32 %v615, %v616
  %v618 = vsel %vm547, %v614, 0.0
  %v619 = vadd.f32 %v617, %v618
  %620 = vadd.xlane.f32.xlu0 %v619
  %v621 = vpop.xlane.xlu0 %620
  %v622 = vmul.f32 %v612, %v607
  %v623 = vmul.f32 %v613, %v608
  %v624 = vmul.f32 %v614, %v606
  %v625 = vsel %vm392, %v622, 0.0
  %v626 = vsel %vm392, %v623, 0.0
  %v627 = vadd.f32 %v625, %v626
  %v628 = vsel %vm547, %v624, 0.0
  %v629 = vadd.f32 %v627, %v628
  %630 = vadd.xlane.f32.xlu0 %v629
  %v631 = vpop.xlane.xlu0 %630
  %v632 = vmul.f32 %v621, 0.00390625
  %v633 = vmul.f32 %v631, 0.00390625
  %v634 = vmul.f32 %v632, %v632
  %v635 = vsub.f32 %v633, %v634
  %v636 = vmax.f32 %v635, 0.0
  %v637 = vsub.f32 %v492, %v632
  %v638 = vsub.f32 %v512, %v632
  %v639 = vsub.f32 %v532, %v632
  %v640 = vadd.f32 %v636, 1e-05
  %v641 = vrsqrt.pop %v640
  %v642 = vmul.f32 %v641, %v640
  %v643 = vmul.f32 %v642, %v641
  %v644 = vmul.f32 0.5, %v643
  %v645 = vsub.f32 1.5, %v644
  %v646 = vmul.f32 %v641, %v645
  %vm647 = vweird.f32 %v640
  %vm648 = vweird.f32 %v641
  %vm649 = vmor %vm647, %vm648
  %v650 = vsel %vm649, %v641, %v646
  %v651 = vmul.f32 %v637, %v650
  %v652 = vmul.f32 %v638, %v650
  %v653 = vmul.f32 %v639, %v650
  %v654 = vsel %vm61, %v583, %v651
  %v655 = vmax.f32 %v581, 0.0
  %v656 = vmax.f32 %v582, 0.0
  %v657 = vmax.f32 %v654, 0.0
  %v658 = vmax.f32 %v652, 0.0
  %v659 = vmax.f32 %v653, 0.0
  %661 = vrot.lane.b32.xlu0 %v659, 65
  %v662 = vpop.permute.xlu0 %661
  %668 = vrot.lane.b32.xlu0 %v655, 1
  %v669 = vpop.permute.xlu0 %668
  %670 = vrot.lane.b32.xlu0 %v656, 1
  %v671 = vpop.permute.xlu0 %670
  %672 = vrot.lane.b32.xlu0 %v657, 1
  %v673 = vpop.permute.xlu0 %672
  %674 = vrot.lane.b32.xlu0 %v658, 1
  %v675 = vpop.permute.xlu0 %674
  %676 = vrot.lane.b32.xlu0 %v659, 1
  %v677 = vpop.permute.xlu0 %676
  %vm678 = vcmask 7168
  %v679 = vsel %vm678, %v669, %v671
  %v680 = vsel %vm678, %v671, %v673
  %v681 = vsel %vm678, %v673, %v675
  %v682 = vsel %vm678, %v675, %v677
  %v688 = vsel %vm678, %v662, %v669
  %689 = vrot.lane.b32.xlu0 %v655, 127
  %v690 = vpop.permute.xlu0 %689
  %691 = vrot.lane.b32.xlu0 %v656, 127
  %v692 = vpop.permute.xlu0 %691
  %693 = vrot.lane.b32.xlu0 %v657, 127
  %v694 = vpop.permute.xlu0 %693
  %695 = vrot.lane.b32.xlu0 %v658, 127
  %v696 = vpop.permute.xlu0 %695
  %697 = vrot.lane.b32.xlu0 %v659, 127
  %v698 = vpop.permute.xlu0 %697
  %v699 = vsel %vm75, %v690, %v692
  %v700 = vsel %vm75, %v692, %v694
  %v701 = vsel %vm75, %v694, %v696
  %v702 = vsel %vm75, %v696, %v698
  %708 = vrot.lane.b32.xlu0 %v655, 63
  %v709 = vpop.permute.xlu0 %708
  %vm711 = vcmask 515072
  %v712 = vsel %vm711, %v698, %v709
  %713 = vrot.lane.b32.xlu0 %v659, 67
  %v714 = vpop.permute.xlu0 %713
  %716 = vrot.lane.b32.xlu0 %v655, 3
  %v717 = vpop.permute.xlu0 %716
  %718 = vrot.lane.b32.xlu0 %v656, 3
  %v719 = vpop.permute.xlu0 %718
  %720 = vrot.lane.b32.xlu0 %v657, 3
  %v721 = vpop.permute.xlu0 %720
  %722 = vrot.lane.b32.xlu0 %v658, 3
  %v723 = vpop.permute.xlu0 %722
  %724 = vrot.lane.b32.xlu0 %v659, 3
  %v725 = vpop.permute.xlu0 %724
  %vm726 = vcmask 23552
  %v727 = vsel %vm726, %v717, %v719
  %v728 = vsel %vm726, %v719, %v721
  %v729 = vsel %vm726, %v721, %v723
  %v730 = vsel %vm726, %v723, %v725
  %v736 = vsel %vm726, %v714, %v717
  %v737 = vsel %vm29, 1, 0
  %v738 = vperm.slane %v737, 0
  %v739 = vperm.slane %v737, 1
  %v740 = vperm.slane %v737, 2
  %v741 = vperm.slane %v737, 3
  %v742 = vperm.slane %v737, 4
  %vm743 = vcmp.eq.s32.totalorder %v738, 1
  %vm744 = vcmp.eq.s32.totalorder %v739, 1
  %vm745 = vcmp.eq.s32.totalorder %v740, 1
  %vm746 = vcmp.eq.s32.totalorder %v741, 1
  %vm747 = vcmp.eq.s32.totalorder %v742, 1
  %v748 = vsel %vm743, %v736, %v688
  %v749 = vsel %vm744, %v727, %v679
  %v750 = vsel %vm745, %v728, %v680
  %v751 = vsel %vm746, %v729, %v681
  %v752 = vsel %vm747, %v730, %v682
  %v753 = vsel %vm28, 1, 0
  %v754 = vperm.slane %v753, 0
  %v755 = vperm.slane %v753, 1
  %v756 = vperm.slane %v753, 2
  %v757 = vperm.slane %v753, 3
  %v758 = vperm.slane %v753, 4
  %vm759 = vcmp.eq.s32.totalorder %v754, 1
  %vm760 = vcmp.eq.s32.totalorder %v755, 1
  %vm761 = vcmp.eq.s32.totalorder %v756, 1
  %vm762 = vcmp.eq.s32.totalorder %v757, 1
  %vm763 = vcmp.eq.s32.totalorder %v758, 1
  %v764 = vsel %vm759, %v699, %v748
  %v765 = vsel %vm760, %v700, %v749
  %v766 = vsel %vm761, %v701, %v750
  %v767 = vsel %vm762, %v702, %v751
  %v768 = vsel %vm763, %v712, %v752
  %770 = vrot.lane.b32.xlu0 %v764, 110
  %v771 = vpop.permute.xlu0 %770
  %775 = vrot.lane.b32.xlu0 %v764, 18
  %v776 = vpop.permute.xlu0 %775
  %777 = vrot.lane.b32.xlu0 %v765, 18
  %v778 = vpop.permute.xlu0 %777
  %779 = vrot.lane.b32.xlu0 %v766, 18
  %v780 = vpop.permute.xlu0 %779
  %vm781 = vcmask 146432
  %v782 = vsel %vm781, %v776, %v778
  %v783 = vsel %vm781, %v778, %v780
  %787 = vrot.lane.b32.xlu0 %v765, 54
  %v788 = vpop.permute.xlu0 %787
  %789 = vrot.lane.b32.xlu0 %v766, 54
  %v790 = vpop.permute.xlu0 %789
  %v791 = vsel %vm342, %v788, %v790
  %796 = vrot.lane.b32.xlu0 %v767, 54
  %v797 = vpop.permute.xlu0 %796
  %798 = vrot.lane.b32.xlu0 %v768, 54
  %v799 = vpop.permute.xlu0 %798
  %v800 = vsel %vm342, %v790, %v797
  %v801 = vsel %vm342, %v797, %v799
  %804 = vrot.lane.b32.xlu0 %v768, 90
  %v805 = vpop.permute.xlu0 %804
  %v807 = vsel %vm781, %v771, %v776
  %vm808 = vcmask 408576
  %v809 = vsel %vm808, %v783, %v791
  %vm810 = vcmask 556032
  %v811 = vsel %vm810, %v809, %v780
  %vm812 = vcmask 703488
  %v813 = vsel %vm812, %v811, %v790
  %vm814 = vcmask 965632
  %v815 = vsel %vm814, %v801, %v805
  %vm816 = vcmask 64512
  %v817 = vsel %vm816, %v805, 0.0
  %v818 = vld [vmem:[%s3] sm:$0xf]
  %821 = vrot.lane.b32.xlu0 %v813, 92
  %v822 = vpop.permute.xlu0 %821
  %823 = vrot.lane.b32.xlu0 %v800, 92
  %v824 = vpop.permute.xlu0 %823
  %825 = vrot.lane.b32.xlu0 %v815, 92
  %v826 = vpop.permute.xlu0 %825
  %v827 = vsel %vm55, %v822, %v824
  %v828 = vsel %vm55, %v824, %v826
  %v832 = vsel %vm61, %v813, %v827
  %834 = vrot.lane.b32.xlu0 %v807, 127
  %v835 = vpop.permute.xlu0 %834
  %836 = vrot.lane.b32.xlu0 %v782, 127
  %v837 = vpop.permute.xlu0 %836
  %838 = vrot.lane.b32.xlu0 %v813, 127
  %v839 = vpop.permute.xlu0 %838
  %v840 = vsel %vm75, %v835, %v837
  %v841 = vsel %vm75, %v837, %v839
  %843 = vrot.lane.b32.xlu0 %v813, 91
  %v844 = vpop.permute.xlu0 %843
  %845 = vrot.lane.b32.xlu0 %v800, 91
  %v846 = vpop.permute.xlu0 %845
  %847 = vrot.lane.b32.xlu0 %v815, 91
  %v848 = vpop.permute.xlu0 %847
  %v849 = vsel %vm91, %v844, %v846
  %v850 = vsel %vm91, %v846, %v848
  %v852 = vsel %vm61, %v839, %v849
  %853 = vrot.lane.b32.xlu0 %v807, 126
  %v854 = vpop.permute.xlu0 %853
  %855 = vrot.lane.b32.xlu0 %v782, 126
  %v856 = vpop.permute.xlu0 %855
  %857 = vrot.lane.b32.xlu0 %v813, 126
  %v858 = vpop.permute.xlu0 %857
  %v859 = vsel %vm108, %v854, %v856
  %v860 = vsel %vm108, %v856, %v858
  %864 = vrot.lane.b32.xlu0 %v813, 90
  %v865 = vpop.permute.xlu0 %864
  %866 = vrot.lane.b32.xlu0 %v800, 90
  %v867 = vpop.permute.xlu0 %866
  %868 = vrot.lane.b32.xlu0 %v815, 90
  %v869 = vpop.permute.xlu0 %868
  %v870 = vsel %vm126, %v865, %v867
  %v871 = vsel %vm126, %v867, %v869
  %v875 = vsel %vm61, %v858, %v870
  %876 = vrot.lane.b32.xlu0 %v807, 110
  %v877 = vpop.permute.xlu0 %876
  %878 = vrot.lane.b32.xlu0 %v782, 110
  %v879 = vpop.permute.xlu0 %878
  %880 = vrot.lane.b32.xlu0 %v813, 110
  %v881 = vpop.permute.xlu0 %880
  %v882 = vsel %vm145, %v877, %v879
  %v883 = vsel %vm145, %v879, %v881
  %885 = vrot.lane.b32.xlu0 %v813, 74
  %v886 = vpop.permute.xlu0 %885
  %887 = vrot.lane.b32.xlu0 %v800, 74
  %v888 = vpop.permute.xlu0 %887
  %889 = vrot.lane.b32.xlu0 %v815, 74
  %v890 = vpop.permute.xlu0 %889
  %v891 = vsel %vm161, %v886, %v888
  %v892 = vsel %vm161, %v888, %v890
  %v894 = vsel %vm61, %v881, %v891
  %895 = vrot.lane.b32.xlu0 %v807, 109
  %v896 = vpop.permute.xlu0 %895
  %897 = vrot.lane.b32.xlu0 %v782, 109
  %v898 = vpop.permute.xlu0 %897
  %899 = vrot.lane.b32.xlu0 %v813, 109
  %v900 = vpop.permute.xlu0 %899
  %v901 = vsel %vm178, %v896, %v898
  %v902 = vsel %vm178, %v898, %v900
  %906 = vrot.lane.b32.xlu0 %v813, 73
  %v907 = vpop.permute.xlu0 %906
  %908 = vrot.lane.b32.xlu0 %v800, 73
  %v909 = vpop.permute.xlu0 %908
  %910 = vrot.lane.b32.xlu0 %v815, 73
  %v911 = vpop.permute.xlu0 %910
  %v912 = vsel %vm196, %v907, %v909
  %v913 = vsel %vm196, %v909, %v911
  %v917 = vsel %vm61, %v900, %v912
  %918 = vrot.lane.b32.xlu0 %v807, 108
  %v919 = vpop.permute.xlu0 %918
  %920 = vrot.lane.b32.xlu0 %v782, 108
  %v921 = vpop.permute.xlu0 %920
  %922 = vrot.lane.b32.xlu0 %v813, 108
  %v923 = vpop.permute.xlu0 %922
  %v924 = vsel %vm215, %v919, %v921
  %v925 = vsel %vm215, %v921, %v923
  %927 = vrot.lane.b32.xlu0 %v813, 72
  %v928 = vpop.permute.xlu0 %927
  %929 = vrot.lane.b32.xlu0 %v800, 72
  %v930 = vpop.permute.xlu0 %929
  %931 = vrot.lane.b32.xlu0 %v815, 72
  %v932 = vpop.permute.xlu0 %931
  %v933 = vsel %vm231, %v928, %v930
  %v934 = vsel %vm231, %v930, %v932
  %v936 = vsel %vm61, %v923, %v933
  %937 = vrot.lane.b32.xlu0 %v807, 92
  %v938 = vpop.permute.xlu0 %937
  %939 = vrot.lane.b32.xlu0 %v782, 92
  %v940 = vpop.permute.xlu0 %939
  %v941 = vsel %vm55, %v938, %v940
  %v942 = vsel %vm55, %v940, %v822
  %947 = vrot.lane.b32.xlu0 %v813, 56
  %v948 = vpop.permute.xlu0 %947
  %949 = vrot.lane.b32.xlu0 %v800, 56
  %v950 = vpop.permute.xlu0 %949
  %951 = vrot.lane.b32.xlu0 %v815, 56
  %v952 = vpop.permute.xlu0 %951
  %953 = vrot.lane.b32.xlu0 %v817, 56
  %v954 = vpop.permute.xlu0 %953
  %v955 = vsel %vm268, %v948, %v950
  %v956 = vsel %vm268, %v950, %v952
  %v957 = vsel %vm268, %v952, %v954
  %v961 = vsel %vm61, %v822, %v955
  %962 = vrot.lane.b32.xlu0 %v807, 91
  %v963 = vpop.permute.xlu0 %962
  %964 = vrot.lane.b32.xlu0 %v782, 91
  %v965 = vpop.permute.xlu0 %964
  %v966 = vsel %vm91, %v963, %v965
  %v967 = vsel %vm91, %v965, %v844
  %969 = vrot.lane.b32.xlu0 %v813, 55
  %v970 = vpop.permute.xlu0 %969
  %971 = vrot.lane.b32.xlu0 %v800, 55
  %v972 = vpop.permute.xlu0 %971
  %973 = vrot.lane.b32.xlu0 %v815, 55
  %v974 = vpop.permute.xlu0 %973
  %975 = vrot.lane.b32.xlu0 %v817, 55
  %v976 = vpop.permute.xlu0 %975
  %v977 = vsel %vm306, %v970, %v972
  %v978 = vsel %vm306, %v972, %v974
  %v979 = vsel %vm306, %v974, %v976
  %v981 = vsel %vm61, %v844, %v977
  %982 = vrot.lane.b32.xlu0 %v807, 90
  %v983 = vpop.permute.xlu0 %982
  %984 = vrot.lane.b32.xlu0 %v782, 90
  %v985 = vpop.permute.xlu0 %984
  %v986 = vsel %vm126, %v983, %v985
  %v987 = vsel %vm126, %v985, %v865
  %989 = vrot.lane.b32.xlu0 %v813, 54
  %v990 = vpop.permute.xlu0 %989
  %991 = vrot.lane.b32.xlu0 %v800, 54
  %v992 = vpop.permute.xlu0 %991
  %993 = vrot.lane.b32.xlu0 %v815, 54
  %v994 = vpop.permute.xlu0 %993
  %995 = vrot.lane.b32.xlu0 %v817, 54
  %v996 = vpop.permute.xlu0 %995
  %v997 = vsel %vm342, %v990, %v992
  %v998 = vsel %vm342, %v992, %v994
  %v999 = vsel %vm342, %v994, %v996
  %v1001 = vsel %vm61, %v865, %v997
  %v1003 = vrot.slane %v840, 4
  %v1004 = vrot.slane %v841, 4
  %v1005 = vrot.slane %v852, 4
  %v1006 = vrot.slane %v850, 4
  %v1007 = vrot.slane %v848, 4
  %v1014 = vrot.slane %v882, 4
  %v1015 = vrot.slane %v883, 4
  %v1016 = vrot.slane %v894, 4
  %v1017 = vrot.slane %v892, 4
  %v1018 = vrot.slane %v890, 4
  %v1025 = vrot.slane %v924, 4
  %v1026 = vrot.slane %v925, 4
  %v1027 = vrot.slane %v936, 4
  %v1028 = vrot.slane %v934, 4
  %v1029 = vrot.slane %v932, 4
  %v1036 = vrot.slane %v966, 4
  %v1037 = vrot.slane %v967, 4
  %v1038 = vrot.slane %v981, 4
  %v1039 = vrot.slane %v978, 4
  %v1040 = vrot.slane %v979, 4
  %v1046 = vsel %vm392, %v807, %v1003
  %v1047 = vsel %vm392, %v782, %v1004
  %v1048 = vsel %vm392, %v832, %v1005
  %v1049 = vsel %vm392, %v828, %v1006
  %v1050 = vsel %vm392, %v826, %v1007
  %v1051 = vsel %vm392, %v859, %v1014
  %v1052 = vsel %vm392, %v860, %v1015
  %v1053 = vsel %vm392, %v875, %v1016
  %v1054 = vsel %vm392, %v871, %v1017
  %v1055 = vsel %vm392, %v869, %v1018
  %v1056 = vsel %vm392, %v901, %v1025
  %v1057 = vsel %vm392, %v902, %v1026
  %v1058 = vsel %vm392, %v917, %v1027
  %v1059 = vsel %vm392, %v913, %v1028
  %v1060 = vsel %vm392, %v911, %v1029
  %v1061 = vsel %vm392, %v941, %v1036
  %v1062 = vsel %vm392, %v942, %v1037
  %v1063 = vsel %vm392, %v961, %v1038
  %v1064 = vsel %vm392, %v956, %v1039
  %v1065 = vsel %vm392, %v957, %v1040
  %v1066 = vld [vmem:[%s4] sm:$0xf]
  %1068 = vset.pattern.permute.xlu0 0
  %1069 = vperm.xlu0 %1068, %v1066
  %v1070 = vpop.permute.xlu0 %1069
  %v1073 = vsel %vm419, %v818, 0
  %v1075 = vsel %vm392, %v986, 0
  %v1077 = vsel %vm392, %v987, 0
  %v1080 = vsel %vm392, %v1001, 0
  %v1082 = vsel %vm392, %v998, 0
  %v1084 = vsel %vm392, %v999, 0
  %1086 = vmatpush.msra.mxu0 0.0
  %1087 = vmatpush.msra.mxu0 0.0
  %1088 = vmatpush.msra.mxu0 0.0
  %1089 = vmatpush.msra.mxu0 0.0
  %1090 = vmatpush.msra.mxu0 0.0
  %1091 = vmatpush.msra.mxu0 0.0
  %1092 = vmatpush.msra.mxu0 0.0
  %1093 = vmatpush.msra.mxu0 0.0
  %1094 = vmatpush.msra.mxu0 0.0
  %1095 = vmatpush.msra.mxu0 0.0
  %1096 = vmatpush.msra.mxu0 0.0
  %1097 = vmatpush.msra.mxu0 %v1075
  %1098 = vmatpush.msra.mxu0 %v1061
  %1099 = vmatpush.msra.mxu0 %v1056
  %1100 = vmatpush.msra.mxu0 %v1051
  %1101 = vmatpush.msra.mxu0 %v1046
  %1102 = vmatmul.f32.gmra.mxu0 %v1073
  %v1103 = vpop.f32.mrf.mxu0
  %v1104 = vadd.f32 %v1070, %v1103
  %1105 = vdwg.mxu0
  %1106 = vmatpush.msra.mxu0 0.0
  %1107 = vmatpush.msra.mxu0 0.0
  %1108 = vmatpush.msra.mxu0 0.0
  %1109 = vmatpush.msra.mxu0 0.0
  %1110 = vmatpush.msra.mxu0 0.0
  %1111 = vmatpush.msra.mxu0 0.0
  %1112 = vmatpush.msra.mxu0 0.0
  %1113 = vmatpush.msra.mxu0 0.0
  %1114 = vmatpush.msra.mxu0 0.0
  %1115 = vmatpush.msra.mxu0 0.0
  %1116 = vmatpush.msra.mxu0 0.0
  %1117 = vmatpush.msra.mxu0 %v1077
  %1118 = vmatpush.msra.mxu0 %v1062
  %1119 = vmatpush.msra.mxu0 %v1057
  %1120 = vmatpush.msra.mxu0 %v1052
  %1121 = vmatpush.msra.mxu0 %v1047
  %1122 = vmatmul.f32.gmra.mxu0 %v1073
  %v1123 = vpop.f32.mrf.mxu0
  %v1124 = vadd.f32 %v1070, %v1123
  %1125 = vdwg.mxu0
  %1126 = vmatpush.msra.mxu0 0.0
  %1127 = vmatpush.msra.mxu0 0.0
  %1128 = vmatpush.msra.mxu0 0.0
  %1129 = vmatpush.msra.mxu0 0.0
  %1130 = vmatpush.msra.mxu0 0.0
  %1131 = vmatpush.msra.mxu0 0.0
  %1132 = vmatpush.msra.mxu0 0.0
  %1133 = vmatpush.msra.mxu0 0.0
  %1134 = vmatpush.msra.mxu0 0.0
  %1135 = vmatpush.msra.mxu0 0.0
  %1136 = vmatpush.msra.mxu0 0.0
  %1137 = vmatpush.msra.mxu0 %v1080
  %1138 = vmatpush.msra.mxu0 %v1063
  %1139 = vmatpush.msra.mxu0 %v1058
  %1140 = vmatpush.msra.mxu0 %v1053
  %1141 = vmatpush.msra.mxu0 %v1048
  %1142 = vmatmul.f32.gmra.mxu0 %v1073
  %v1143 = vpop.f32.mrf.mxu0
  %v1144 = vadd.f32 %v1070, %v1143
  %1145 = vdwg.mxu0
  %1146 = vmatpush.msra.mxu0 0.0
  %1147 = vmatpush.msra.mxu0 0.0
  %1148 = vmatpush.msra.mxu0 0.0
  %1149 = vmatpush.msra.mxu0 0.0
  %1150 = vmatpush.msra.mxu0 0.0
  %1151 = vmatpush.msra.mxu0 0.0
  %1152 = vmatpush.msra.mxu0 0.0
  %1153 = vmatpush.msra.mxu0 0.0
  %1154 = vmatpush.msra.mxu0 0.0
  %1155 = vmatpush.msra.mxu0 0.0
  %1156 = vmatpush.msra.mxu0 0.0
  %1157 = vmatpush.msra.mxu0 %v1082
  %1158 = vmatpush.msra.mxu0 %v1064
  %1159 = vmatpush.msra.mxu0 %v1059
  %1160 = vmatpush.msra.mxu0 %v1054
  %1161 = vmatpush.msra.mxu0 %v1049
  %1162 = vmatmul.f32.gmra.mxu0 %v1073
  %v1163 = vpop.f32.mrf.mxu0
  %v1164 = vadd.f32 %v1070, %v1163
  %1165 = vdwg.mxu0
  %1166 = vmatpush.msra.mxu0 0.0
  %1167 = vmatpush.msra.mxu0 0.0
  %1168 = vmatpush.msra.mxu0 0.0
  %1169 = vmatpush.msra.mxu0 0.0
  %1170 = vmatpush.msra.mxu0 0.0
  %1171 = vmatpush.msra.mxu0 0.0
  %1172 = vmatpush.msra.mxu0 0.0
  %1173 = vmatpush.msra.mxu0 0.0
  %1174 = vmatpush.msra.mxu0 0.0
  %1175 = vmatpush.msra.mxu0 0.0
  %1176 = vmatpush.msra.mxu0 0.0
  %1177 = vmatpush.msra.mxu0 %v1084
  %1178 = vmatpush.msra.mxu0 %v1065
  %1179 = vmatpush.msra.mxu0 %v1060
  %1180 = vmatpush.msra.mxu0 %v1055
  %1181 = vmatpush.msra.mxu0 %v1050
  %1182 = vmatmul.f32.gmra.mxu0 %v1073
  %v1183 = vpop.f32.mrf.mxu0
  %v1184 = vadd.f32 %v1070, %v1183
  %1185 = vdwg.mxu0
  %v1186 = vsel %vm538, %v1104, 0.0
  %v1187 = vsel %vm539, %v1124, 0.0
  %v1188 = vsel %vm540, %v1144, 0.0
  %v1189 = vsel %vm392, %v1186, 0.0
  %v1190 = vsel %vm392, %v1187, 0.0
  %v1191 = vadd.f32 %v1189, %v1190
  %v1192 = vsel %vm547, %v1188, 0.0
  %v1193 = vadd.f32 %v1191, %v1192
  %1194 = vadd.xlane.f32.xlu0 %v1193
  %v1195 = vpop.xlane.xlu0 %1194
  %v1196 = vmul.f32 %v1186, %v1104
  %v1197 = vmul.f32 %v1187, %v1124
  %v1198 = vmul.f32 %v1188, %v1144
  %v1199 = vsel %vm392, %v1196, 0.0
  %v1200 = vsel %vm392, %v1197, 0.0
  %v1201 = vadd.f32 %v1199, %v1200
  %v1202 = vsel %vm547, %v1198, 0.0
  %v1203 = vadd.f32 %v1201, %v1202
  %1204 = vadd.xlane.f32.xlu0 %v1203
  %v1205 = vpop.xlane.xlu0 %1204
  %v1206 = vmul.f32 %v1195, 0.00390625
  %v1207 = vmul.f32 %v1205, 0.00390625
  %v1208 = vmul.f32 %v1206, %v1206
  %v1209 = vsub.f32 %v1207, %v1208
  %v1210 = vmax.f32 %v1209, 0.0
  %v1211 = vsub.f32 %v1104, %v1206
  %v1212 = vsub.f32 %v1124, %v1206
  %v1213 = vsub.f32 %v1144, %v1206
  %v1214 = vadd.f32 %v1210, 1e-05
  %v1215 = vrsqrt.pop %v1214
  %v1216 = vmul.f32 %v1215, %v1214
  %v1217 = vmul.f32 %v1216, %v1215
  %v1218 = vmul.f32 0.5, %v1217
  %v1219 = vsub.f32 1.5, %v1218
  %v1220 = vmul.f32 %v1215, %v1219
  %vm1221 = vweird.f32 %v1214
  %vm1222 = vweird.f32 %v1215
  %vm1223 = vmor %vm1221, %vm1222
  %v1224 = vsel %vm1223, %v1215, %v1220
  %v1225 = vmul.f32 %v1211, %v1224
  %v1226 = vmul.f32 %v1212, %v1224
  %v1227 = vmul.f32 %v1213, %v1224
  %1231 = vrot.lane.b32.xlu0 %v1144, 96
  %v1232 = vpop.permute.xlu0 %1231
  %1233 = vrot.lane.b32.xlu0 %v1164, 96
  %v1234 = vpop.permute.xlu0 %1233
  %1235 = vrot.lane.b32.xlu0 %v1184, 96
  %v1236 = vpop.permute.xlu0 %1235
  %v1237 = vsel %vm588, %v1232, %v1234
  %v1238 = vsel %vm588, %v1234, %v1236
  %v1242 = vsel %vm595, %v1237, 0.0
  %v1243 = vsel %vm596, %v1238, 0.0
  %v1244 = vsel %vm597, %v1236, 0.0
  %v1245 = vsel %vm392, %v1242, 0.0
  %v1246 = vsel %vm392, %v1243, 0.0
  %v1247 = vadd.f32 %v1245, %v1246
  %v1248 = vsel %vm547, %v1244, 0.0
  %v1249 = vadd.f32 %v1247, %v1248
  %1250 = vadd.xlane.f32.xlu0 %v1249
  %v1251 = vpop.xlane.xlu0 %1250
  %v1252 = vmul.f32 %v1242, %v1237
  %v1253 = vmul.f32 %v1243, %v1238
  %v1254 = vmul.f32 %v1244, %v1236
  %v1255 = vsel %vm392, %v1252, 0.0
  %v1256 = vsel %vm392, %v1253, 0.0
  %v1257 = vadd.f32 %v1255, %v1256
  %v1258 = vsel %vm547, %v1254, 0.0
  %v1259 = vadd.f32 %v1257, %v1258
  %1260 = vadd.xlane.f32.xlu0 %v1259
  %v1261 = vpop.xlane.xlu0 %1260
  %v1262 = vmul.f32 %v1251, 0.00390625
  %v1263 = vmul.f32 %v1261, 0.00390625
  %v1264 = vmul.f32 %v1262, %v1262
  %v1265 = vsub.f32 %v1263, %v1264
  %v1266 = vmax.f32 %v1265, 0.0
  %v1267 = vsub.f32 %v1144, %v1262
  %v1268 = vsub.f32 %v1164, %v1262
  %v1269 = vsub.f32 %v1184, %v1262
  %v1270 = vadd.f32 %v1266, 1e-05
  %v1271 = vrsqrt.pop %v1270
  %v1272 = vmul.f32 %v1271, %v1270
  %v1273 = vmul.f32 %v1272, %v1271
  %v1274 = vmul.f32 0.5, %v1273
  %v1275 = vsub.f32 1.5, %v1274
  %v1276 = vmul.f32 %v1271, %v1275
  %vm1277 = vweird.f32 %v1270
  %vm1278 = vweird.f32 %v1271
  %vm1279 = vmor %vm1277, %vm1278
  %v1280 = vsel %vm1279, %v1271, %v1276
  %v1281 = vmul.f32 %v1267, %v1280
  %v1282 = vmul.f32 %v1268, %v1280
  %v1283 = vmul.f32 %v1269, %v1280
  %v1284 = vsel %vm61, %v1227, %v1281
  %v1285 = vadd.f32 %v1225, %v179
  %v1286 = vadd.f32 %v1226, %v180
  %v1287 = vadd.f32 %v1284, %v202
  %v1288 = vadd.f32 %v1282, %v198
  %v1289 = vadd.f32 %v1283, %v195
  %v1294 = vrot.slane %v1286, 4
  %v1295 = vrot.slane %v1288, 4
  %v1296 = vsel %vm392, %v1285, %v1294
  %v1297 = vsel %vm392, %v1287, %v1295
  %1300 = vst [vmem:[%s6] sm:$0xff] %v1296
  %1301 = vst [vmem:[%s6 + $0x8] sm:$0xff] %v1297
  %vm1302 = vcmask 519168
  %1303 = vst.msk [vmem:[%s6 + $0x10] sm:$0xf] %vm1302, %v1289
  // Predicated region
  $region26: #{ins_res_block.1} parent=0 // pred_check
    _
  $region27: #{ins_res_block.1} parent=0 // pred_check_branch
    %1305 = sbr.rel (0) target = $region29
  $region28: #{ins_res_block.1} parent=0 // pred_region
    _
  $region29: #{ins_res_block.1} parent=0 // pred_fallthru
    _
  // Predicated region
  $region30: #{ins_res_block.1} parent=0 // pred_check
    _
  $region31: #{ins_res_block.1} parent=0 // pred_check_branch
    %1307 = sbr.rel (0) target = $region33
  $region32: #{ins_res_block.1} parent=0 // pred_region
    _
  $region33: #{ins_res_block.1} parent=0 // pred_fallthru
    _

</llo_original>
